<compile_context>
chip_gen: v5e
topology: v5e:2x2
jax: 0.10.0
libtpu: 0.0.40
codegen_flags: <defaults>
</compile_context>

<pallas_src>
import jax
import jax.numpy as jnp
from jax import lax
from jax.experimental import pallas as pl
from jax.experimental.pallas import tpu as pltpu


def fair_nn_kernel(x_ref, w1_ref, b1_ref, w2_ref, b2_ref, w3_ref, wres_ref,
                   b3_ref, o_ref):
    # Standardization already folded into (w1, b1, wres, b3) in the wrapper.
    x = x_ref[...]                                              # (tm, p) raw input

    h = jnp.dot(x, w1_ref[...], preferred_element_type=jnp.float32) + b1_ref[...]
    h = jnp.maximum(h, 0.0)
    h = jnp.dot(h, w2_ref[...], preferred_element_type=jnp.float32) + b2_ref[...]
    h = jnp.maximum(h, 0.0)

    # Final projection + residual.  Each is (1, K) contracted with (tm, K)
    # over K -> (1, tm): the batch lands on the lane axis, so the output store
    # is an unmasked full-lane vst instead of a (tm, 1) masked store.  No
    # concat => no non-128-aligned lane relayout.
    dn = (((1,), (1,)), ((), ()))
    out_row = lax.dot_general(w3_ref[...], h, dn,
                              preferred_element_type=jnp.float32)      # (1, tm)
    out_row = out_row + lax.dot_general(wres_ref[...], x, dn,
                                        preferred_element_type=jnp.float32)

    o_ref[...] = (out_row + b3_ref[0]).astype(o_ref.dtype)


def fair_nn_forward(x, x_mean, x_std, params, *, tm=1024):
    """Fused forward pass: one pallas_call, batch-tiled, lane-dense output."""
    n, p = x.shape
    w1, b1, w2, b2, w3, b3, wres = params
    width = w1.shape[1]

    assert tm % 128 == 0, "tm must be a multiple of 128 (lane-dense output tiles)"
    # Don't overpad tiny batches; keep tm a multiple of 128.
    tm = max(128, min(tm, pl.cdiv(n, 128) * 128))

    # ---- Wrapper-side algebra: fold (x - mean)/std into the weights ----------
    inv_std = 1.0 / x_std                                       # (1, p)
    ms = x_mean * inv_std                                       # (1, p)
    w1f = w1 * inv_std.reshape(p, 1)                            # (p, width)
    b1f = b1 - ms @ w1                                          # (1, width)
    wresf = (wres * inv_std.reshape(p, 1)).T                    # (1, p) row
    w3r = w3.T                                                  # (1, width) row
    b3f = (b3 - ms @ wres).reshape(-1)                          # (1,) scalar bias

    # ---- Ragged batch: pad to a multiple of tm, slice afterwards -------------
    n_pad = pl.cdiv(n, tm) * tm
    if n_pad != n:
        x = jnp.pad(x, ((0, n_pad - n), (0, 0)))
    grid = (n_pad // tm,)

    full = lambda i: (0, 0)
    in_specs = [
        pl.BlockSpec((tm, p), lambda i: (i, 0)),                # x (batch-tiled)
        pl.BlockSpec((p, width), full),                         # W1 (folded)
        pl.BlockSpec((1, width), full),                         # b1 (folded)
        pl.BlockSpec((width, width), full),                     # W2
        pl.BlockSpec((1, width), full),                         # b2
        pl.BlockSpec((1, width), full),                         # W3 row
        pl.BlockSpec((1, p), full),                             # Wres' row (folded)
        pl.BlockSpec(memory_space=pltpu.MemorySpace.SMEM),      # b3 (folded, scalar)
    ]
    out_specs = pl.BlockSpec((1, tm), lambda i: (0, i))         # lane-dense (1, n_pad)

    out_row = pl.pallas_call(
        fair_nn_kernel,
        out_shape=jax.ShapeDtypeStruct((1, n_pad), jnp.float32),
        grid=grid,
        in_specs=in_specs,
        out_specs=out_specs,
        compiler_params=pltpu.CompilerParams(
            dimension_semantics=("parallel",)),
    )(x, w1f, b1f, w2, b2, w3r, wresf, b3f)

    # out_act is None -> identity. Reshape back to the module's (n, 1) layout.
    return out_row[0, :n].reshape(n, 1)


def init_params(key, input_dim, depth, width):
    """nn.Linear-style U(-1/sqrt(fan_in), 1/sqrt(fan_in)) init; weights stored as
    (in_features, out_features). Only the depth=2 configuration is materialized."""
    assert depth == 2, "this script instantiates the depth=2 configuration"
    ks = jax.random.split(key, 7)

    def uniform(k, shape, fan_in):
        bound = 1.0 / jnp.sqrt(jnp.float32(fan_in))
        return jax.random.uniform(k, shape, jnp.float32, -bound, bound)

    w1 = uniform(ks[0], (input_dim, width), input_dim)
    b1 = uniform(ks[1], (1, width), input_dim)
    w2 = uniform(ks[2], (width, width), width)
    b2 = uniform(ks[3], (1, width), width)
    w3 = uniform(ks[4], (width, 1), width)
    b3 = uniform(ks[5], (1, 1), width)
    wres = uniform(ks[6], (input_dim, 1), input_dim)            # linear_res, bias=False
    return (w1, b1, w2, b2, w3, b3, wres)


def reference_forward(x, x_mean, x_std, params):
    w1, b1, w2, b2, w3, b3, wres = params
    xs = (x - x_mean) / x_std
    h = jnp.maximum(xs @ w1 + b1, 0.0)
    h = jnp.maximum(h @ w2 + b2, 0.0)
    out = h @ w3 + b3
    return out + xs @ wres


if __name__ == "__main__":
    # Small shapes consistent with the module: (n, p) input, depth=2, width=32.
    # n=1000 is deliberately ragged (not a multiple of the batch tile).
    input_dim, depth, width = 8, 2, 32
    n = 1000

    key = jax.random.PRNGKey(0)
    k_x, k_p = jax.random.split(key)
    x = jax.random.normal(k_x, (n, input_dim), jnp.float32) * 2.0 + 0.5

    # standardize(train_x): mean/std over axis 0 with keepdims (population std).
    x_mean = jnp.mean(x, axis=0, keepdims=True)
    x_std = jnp.std(x, axis=0, keepdims=True)

    params = init_params(k_p, input_dim, depth, width)

    out = fair_nn_forward(x, x_mean, x_std, params, tm=1024)
    out = jax.block_until_ready(out)

    ref = reference_forward(x, x_mean, x_std, params)
    assert out.shape == (n, 1)
    assert jnp.allclose(out, ref, atol=1e-4, rtol=1e-4), "mismatch vs pure-JAX reference"

    print("KERNEL_OK")
</pallas_src>

<mosaic_0001>
module attributes {stable_mosaic.version = 11 : i64} {
  func.func @fair_nn_kernel(%arg0: i32, %arg1: memref<1024x8xf32, #tpu.memory_space<vmem>>, %arg2: memref<8x32xf32, #tpu.memory_space<vmem>>, %arg3: memref<1x32xf32, #tpu.memory_space<vmem>>, %arg4: memref<32x32xf32, #tpu.memory_space<vmem>>, %arg5: memref<1x32xf32, #tpu.memory_space<vmem>>, %arg6: memref<1x32xf32, #tpu.memory_space<vmem>>, %arg7: memref<1x8xf32, #tpu.memory_space<vmem>>, %arg8: memref<1xf32, #tpu.memory_space<smem>>, %arg9: memref<1x1024xf32, #tpu.memory_space<vmem>>) attributes {dimension_semantics = [#tpu.dimension_semantics<parallel>], iteration_bounds = array<i64: 1>, scalar_prefetch = 0 : i64, scratch_operands = 0 : i64, tpu.core_type = #tpu.core_type<tc>, window_params = [{transform_indices = @transform_0, window_bounds = array<i64: 1024, 8>}, {pipeline_mode = #tpu.pipeline_mode<synchronous>, transform_indices = @transform_1, window_bounds = array<i64: 8, 32>}, {pipeline_mode = #tpu.pipeline_mode<synchronous>, transform_indices = @transform_2, window_bounds = array<i64: 1, 32>}, {pipeline_mode = #tpu.pipeline_mode<synchronous>, transform_indices = @transform_3, window_bounds = array<i64: 32, 32>}, {pipeline_mode = #tpu.pipeline_mode<synchronous>, transform_indices = @transform_4, window_bounds = array<i64: 1, 32>}, {pipeline_mode = #tpu.pipeline_mode<synchronous>, transform_indices = @transform_5, window_bounds = array<i64: 1, 32>}, {pipeline_mode = #tpu.pipeline_mode<synchronous>, transform_indices = @transform_6, window_bounds = array<i64: 1, 8>}, {transform_indices = @transform_7, window_bounds = array<i64: 1>}, {transform_indices = @transform_8, window_bounds = array<i64: 1, 1024>}]} {
    %c0 = arith.constant 0 : index
    %c0_0 = arith.constant 0 : index
    %0 = vector.load %arg1[%c0, %c0_0] : memref<1024x8xf32, #tpu.memory_space<vmem>>, vector<1024x8xf32>
    %c0_1 = arith.constant 0 : index
    %c0_2 = arith.constant 0 : index
    %1 = vector.load %arg2[%c0_1, %c0_2] : memref<8x32xf32, #tpu.memory_space<vmem>>, vector<8x32xf32>
    %cst = arith.constant dense<0.000000e+00> : vector<1024x32xf32>
    %2 = tpu.matmul %0, %1, %cst {dimension_numbers = #tpu.dot_dimension_numbers<[1], [0], [0], [1], [0, 0, 1, 1], [], []>} : vector<1024x8xf32>, vector<8x32xf32>, vector<1024x32xf32> -> vector<1024x32xf32>
    %c0_3 = arith.constant 0 : index
    %c0_4 = arith.constant 0 : index
    %3 = vector.load %arg3[%c0_3, %c0_4] : memref<1x32xf32, #tpu.memory_space<vmem>>, vector<1x32xf32>
    %4 = vector.broadcast %3 : vector<1x32xf32> to vector<1024x32xf32>
    %5 = arith.addf %2, %4 : vector<1024x32xf32>
    %cst_5 = arith.constant 0.000000e+00 : f32
    %6 = vector.broadcast %cst_5 : f32 to vector<1024x32xf32>
    %7 = arith.maximumf %5, %6 : vector<1024x32xf32>
    %c0_6 = arith.constant 0 : index
    %c0_7 = arith.constant 0 : index
    %8 = vector.load %arg4[%c0_6, %c0_7] : memref<32x32xf32, #tpu.memory_space<vmem>>, vector<32x32xf32>
    %cst_8 = arith.constant dense<0.000000e+00> : vector<1024x32xf32>
    %9 = tpu.matmul %7, %8, %cst_8 {dimension_numbers = #tpu.dot_dimension_numbers<[1], [0], [0], [1], [0, 0, 1, 1], [], []>} : vector<1024x32xf32>, vector<32x32xf32>, vector<1024x32xf32> -> vector<1024x32xf32>
    %c0_9 = arith.constant 0 : index
    %c0_10 = arith.constant 0 : index
    %10 = vector.load %arg5[%c0_9, %c0_10] : memref<1x32xf32, #tpu.memory_space<vmem>>, vector<1x32xf32>
    %11 = vector.broadcast %10 : vector<1x32xf32> to vector<1024x32xf32>
    %12 = arith.addf %9, %11 : vector<1024x32xf32>
    %cst_11 = arith.constant 0.000000e+00 : f32
    %13 = vector.broadcast %cst_11 : f32 to vector<1024x32xf32>
    %14 = arith.maximumf %12, %13 : vector<1024x32xf32>
    %c0_12 = arith.constant 0 : index
    %c0_13 = arith.constant 0 : index
    %15 = vector.load %arg6[%c0_12, %c0_13] : memref<1x32xf32, #tpu.memory_space<vmem>>, vector<1x32xf32>
    %cst_14 = arith.constant dense<0.000000e+00> : vector<1x1024xf32>
    %16 = tpu.matmul %15, %14, %cst_14 {dimension_numbers = #tpu.dot_dimension_numbers<[1], [1], [0], [0], [0, 0, 1, 0], [], []>} : vector<1x32xf32>, vector<1024x32xf32>, vector<1x1024xf32> -> vector<1x1024xf32>
    %c0_15 = arith.constant 0 : index
    %c0_16 = arith.constant 0 : index
    %17 = vector.load %arg7[%c0_15, %c0_16] : memref<1x8xf32, #tpu.memory_space<vmem>>, vector<1x8xf32>
    %cst_17 = arith.constant dense<0.000000e+00> : vector<1x1024xf32>
    %18 = tpu.matmul %17, %0, %cst_17 {dimension_numbers = #tpu.dot_dimension_numbers<[1], [1], [0], [0], [0, 0, 1, 0], [], []>} : vector<1x8xf32>, vector<1024x8xf32>, vector<1x1024xf32> -> vector<1x1024xf32>
    %19 = arith.addf %16, %18 : vector<1x1024xf32>
    %c0_18 = arith.constant 0 : index
    %20 = memref.load %arg8[%c0_18] : memref<1xf32, #tpu.memory_space<smem>>
    %21 = vector.broadcast %20 : f32 to vector<1x1024xf32>
    %22 = arith.addf %19, %21 : vector<1x1024xf32>
    %c0_19 = arith.constant 0 : index
    %c0_20 = arith.constant 0 : index
    %23 = vector.load %arg9[%c0_19, %c0_20] : memref<1x1024xf32, #tpu.memory_space<vmem>>, vector<1x1024xf32>
    tpu.vector_store %arg9[%c0_19, %c0_20], %22 {strides = array<i32>} : memref<1x1024xf32, #tpu.memory_space<vmem>>, vector<1x1024xf32>,
    return
  }
  func.func @transform_0(%arg0: i32) -> (i32, i32) {
    %c0_i32 = arith.constant 0 : i32
    %c0_i32_0 = arith.constant 0 : i32
    return %arg0, %c0_i32 : i32, i32
  }
  func.func @transform_1(%arg0: i32) -> (i32, i32) {
    %c0_i32 = arith.constant 0 : i32
    %c0_i32_0 = arith.constant 0 : i32
    %c0_i32_1 = arith.constant 0 : i32
    return %c0_i32, %c0_i32_0 : i32, i32
  }
  func.func @transform_2(%arg0: i32) -> (i32, i32) {
    %c0_i32 = arith.constant 0 : i32
    %c0_i32_0 = arith.constant 0 : i32
    %c0_i32_1 = arith.constant 0 : i32
    return %c0_i32, %c0_i32_0 : i32, i32
  }
  func.func @transform_3(%arg0: i32) -> (i32, i32) {
    %c0_i32 = arith.constant 0 : i32
    %c0_i32_0 = arith.constant 0 : i32
    %c0_i32_1 = arith.constant 0 : i32
    return %c0_i32, %c0_i32_0 : i32, i32
  }
  func.func @transform_4(%arg0: i32) -> (i32, i32) {
    %c0_i32 = arith.constant 0 : i32
    %c0_i32_0 = arith.constant 0 : i32
    %c0_i32_1 = arith.constant 0 : i32
    return %c0_i32, %c0_i32_0 : i32, i32
  }
  func.func @transform_5(%arg0: i32) -> (i32, i32) {
    %c0_i32 = arith.constant 0 : i32
    %c0_i32_0 = arith.constant 0 : i32
    %c0_i32_1 = arith.constant 0 : i32
    return %c0_i32, %c0_i32_0 : i32, i32
  }
  func.func @transform_6(%arg0: i32) -> (i32, i32) {
    %c0_i32 = arith.constant 0 : i32
    %c0_i32_0 = arith.constant 0 : i32
    %c0_i32_1 = arith.constant 0 : i32
    return %c0_i32, %c0_i32_0 : i32, i32
  }
  func.func @transform_7(%arg0: i32) -> i32 {
    %c0_i32 = arith.constant 0 : i32
    %c0_i32_0 = arith.constant 0 : i32
    return %c0_i32 : i32
  }
  func.func @transform_8(%arg0: i32) -> (i32, i32) {
    %c0_i32 = arith.constant 0 : i32
    %c0_i32_0 = arith.constant 0 : i32
    return %c0_i32, %arg0 : i32, i32
  }
}

</mosaic_0001>

<llo_original>
// kernel: tpu_custom_call.1
$region0: #{tpu_custom_call.1}
  #allocation0 [shape = 'u32[]', space=smem, size = 0x4, offset = 0x4, fixed_abs, tag = 'smem constant byte address 0x4 - core index']
  #allocation1 [shape = 'u32[72,128]{1,0:T(1,128)}', space=vmem, size = 0x9000, scoped, tag = 'internal scratch']
  #allocation2 [shape = 'f32[1]{0:T(128)S(6)}', space=smem, size = 0x200, scoped, tag = 'scoped memory for tpu_custom_call.1']
  %s0 = inlined_call_operand.vmem [shape: f32[1024,8], index: 0, kind: input, shape index: {}]
  %s1 = inlined_call_operand.vmem [shape: f32[8,32], index: 1, kind: input, shape index: {}]
  %s2 = inlined_call_operand.vmem [shape: f32[1,32], index: 2, kind: input, shape index: {}]
  %s3 = inlined_call_operand.vmem [shape: f32[32,32], index: 3, kind: input, shape index: {}]
  %s4 = inlined_call_operand.vmem [shape: f32[1,32], index: 4, kind: input, shape index: {}]
  %s5 = inlined_call_operand.vmem [shape: f32[1,32], index: 5, kind: input, shape index: {}]
  %s6 = inlined_call_operand.vmem [shape: f32[1,8], index: 6, kind: input, shape index: {}]
  %s7 = inlined_call_operand.<no memory space> [shape: f32[1], index: 7, kind: input, shape index: {}]
  %s8 = inlined_call_operand.hbm [shape: f32[1,1024], index: 8, kind: output, shape index: {}]
  %s9 = sld [smem:[#allocation0]]
  $region42: #{tpu_custom_call.1} parent=0
    _
  %s11 = ssub.s32 1, %s9
  %s12 = scalar_select 0, %s11, %s9
  %13 = sst [smem:[#allocation2]] %s7
  $region1: #{tpu_custom_call.1} parent=0
    #allocation3 [shape = 'u8[4096]{0}', space=vmem, size = 0x1000, scoped, tag = 'output window, operand 0, single buffered']
    #allocation4 [shape = 's32[1]{0}', space=sflag, size = 0x4, scoped, tag = 'scoped memory for tpu_custom_call.1']
    %14 = vsyncpa [#allocation4], 0
    // Predicated region
    $region2: #{tpu_custom_call.1} parent=1 // pred_check
      _
    $region3: #{tpu_custom_call.1} parent=1 // pred_check_branch
      %16 = sbr.rel (0) target = $region5
    $region4: #{tpu_custom_call.1} parent=1 // pred_region
      _
    $region5: #{tpu_custom_call.1} parent=1 // pred_fallthru
      _
    // Predicated region
    $region6: #{tpu_custom_call.1} parent=1 // pred_check
      _
    $region7: #{tpu_custom_call.1} parent=1 // pred_check_branch
      %18 = sbr.rel (0) target = $region9
    $region8: #{tpu_custom_call.1} parent=1 // pred_region
      _
    $region9: #{tpu_custom_call.1} parent=1 // pred_fallthru
      _
    // Predicated region
    $region10: #{tpu_custom_call.1} parent=1 // pred_check
      _
    $region11: #{tpu_custom_call.1} parent=1 // pred_check_branch
      %20 = sbr.rel (0) target = $region13
    $region12: #{tpu_custom_call.1} parent=1 // pred_region
      _
    $region13: #{tpu_custom_call.1} parent=1 // pred_fallthru
      _
    // Predicated region
    $region14: #{tpu_custom_call.1} parent=1 // pred_check
      _
    $region15: #{tpu_custom_call.1} parent=1 // pred_check_branch
      %22 = sbr.rel (0) target = $region17
    $region16: #{tpu_custom_call.1} parent=1 // pred_region
      _
    $region17: #{tpu_custom_call.1} parent=1 // pred_fallthru
      _
    // Predicated region
    $region18: #{tpu_custom_call.1} parent=1 // pred_check
      _
    $region19: #{tpu_custom_call.1} parent=1 // pred_check_branch
      %24 = sbr.rel (0) target = $region21
    $region20: #{tpu_custom_call.1} parent=1 // pred_region
      _
    $region21: #{tpu_custom_call.1} parent=1 // pred_fallthru
      _
    // Predicated region
    $region22: #{tpu_custom_call.1} parent=1 // pred_check
      _
    $region23: #{tpu_custom_call.1} parent=1 // pred_check_branch
      %26 = sbr.rel (0) target = $region25
    $region24: #{tpu_custom_call.1} parent=1 // pred_region
      _
    $region25: #{tpu_custom_call.1} parent=1 // pred_fallthru
      _
    // Predicated region
    $region26: #{tpu_custom_call.1} parent=1 // pred_check
      _
    $region27: #{tpu_custom_call.1} parent=1 // pred_check_branch
      %28 = sbr.rel (0) target = $region29
    $region28: #{tpu_custom_call.1} parent=1 // pred_region
      _
    $region29: #{tpu_custom_call.1} parent=1 // pred_fallthru
      _
    // Predicated region
    $region30: #{tpu_custom_call.1} parent=1 // pred_check
      _
    $region31: #{tpu_custom_call.1} parent=1 // pred_check_branch
      %30 = sbr.rel (0) target = $region33
    $region32: #{tpu_custom_call.1} parent=1 // pred_region
      _
    $region33: #{tpu_custom_call.1} parent=1 // pred_fallthru
      _
    %v31 = vld [vmem:[%s0] sm:$0xff]
    %v32 = vld [vmem:[%s0 + $0x8] sm:$0xff]
    %v33 = vld [vmem:[%s0 + $0x10] sm:$0xff]
    %v34 = vld [vmem:[%s0 + $0x18] sm:$0xff]
    %v35 = vld [vmem:[%s0 + $0x20] sm:$0xff]
    %v36 = vld [vmem:[%s0 + $0x28] sm:$0xff]
    %v37 = vld [vmem:[%s0 + $0x30] sm:$0xff]
    %v38 = vld [vmem:[%s0 + $0x38] sm:$0xff]
    %v39 = vld [vmem:[%s0 + $0x40] sm:$0xff]
    %v40 = vld [vmem:[%s0 + $0x48] sm:$0xff]
    %v41 = vld [vmem:[%s0 + $0x50] sm:$0xff]
    %v42 = vld [vmem:[%s0 + $0x58] sm:$0xff]
    %v43 = vld [vmem:[%s0 + $0x60] sm:$0xff]
    %v44 = vld [vmem:[%s0 + $0x68] sm:$0xff]
    %v45 = vld [vmem:[%s0 + $0x70] sm:$0xff]
    %v46 = vld [vmem:[%s0 + $0x78] sm:$0xff]
    %v47 = vld [vmem:[%s0 + $0x80] sm:$0xff]
    %v48 = vld [vmem:[%s0 + $0x88] sm:$0xff]
    %v49 = vld [vmem:[%s0 + $0x90] sm:$0xff]
    %v50 = vld [vmem:[%s0 + $0x98] sm:$0xff]
    %v51 = vld [vmem:[%s0 + $0xa0] sm:$0xff]
    %v52 = vld [vmem:[%s0 + $0xa8] sm:$0xff]
    %v53 = vld [vmem:[%s0 + $0xb0] sm:$0xff]
    %v54 = vld [vmem:[%s0 + $0xb8] sm:$0xff]
    %v55 = vld [vmem:[%s0 + $0xc0] sm:$0xff]
    %v56 = vld [vmem:[%s0 + $0xc8] sm:$0xff]
    %v57 = vld [vmem:[%s0 + $0xd0] sm:$0xff]
    %v58 = vld [vmem:[%s0 + $0xd8] sm:$0xff]
    %v59 = vld [vmem:[%s0 + $0xe0] sm:$0xff]
    %v60 = vld [vmem:[%s0 + $0xe8] sm:$0xff]
    %v61 = vld [vmem:[%s0 + $0xf0] sm:$0xff]
    %v62 = vld [vmem:[%s0 + $0xf8] sm:$0xff]
    %v63 = vld [vmem:[%s0 + $0x100] sm:$0xff]
    %v64 = vld [vmem:[%s0 + $0x108] sm:$0xff]
    %v65 = vld [vmem:[%s0 + $0x110] sm:$0xff]
    %v66 = vld [vmem:[%s0 + $0x118] sm:$0xff]
    %v67 = vld [vmem:[%s0 + $0x120] sm:$0xff]
    %v68 = vld [vmem:[%s0 + $0x128] sm:$0xff]
    %v69 = vld [vmem:[%s0 + $0x130] sm:$0xff]
    %v70 = vld [vmem:[%s0 + $0x138] sm:$0xff]
    %v71 = vld [vmem:[%s0 + $0x140] sm:$0xff]
    %v72 = vld [vmem:[%s0 + $0x148] sm:$0xff]
    %v73 = vld [vmem:[%s0 + $0x150] sm:$0xff]
    %v74 = vld [vmem:[%s0 + $0x158] sm:$0xff]
    %v75 = vld [vmem:[%s0 + $0x160] sm:$0xff]
    %v76 = vld [vmem:[%s0 + $0x168] sm:$0xff]
    %v77 = vld [vmem:[%s0 + $0x170] sm:$0xff]
    %v78 = vld [vmem:[%s0 + $0x178] sm:$0xff]
    %v79 = vld [vmem:[%s0 + $0x180] sm:$0xff]
    %v80 = vld [vmem:[%s0 + $0x188] sm:$0xff]
    %v81 = vld [vmem:[%s0 + $0x190] sm:$0xff]
    %v82 = vld [vmem:[%s0 + $0x198] sm:$0xff]
    %v83 = vld [vmem:[%s0 + $0x1a0] sm:$0xff]
    %v84 = vld [vmem:[%s0 + $0x1a8] sm:$0xff]
    %v85 = vld [vmem:[%s0 + $0x1b0] sm:$0xff]
    %v86 = vld [vmem:[%s0 + $0x1b8] sm:$0xff]
    %v87 = vld [vmem:[%s0 + $0x1c0] sm:$0xff]
    %v88 = vld [vmem:[%s0 + $0x1c8] sm:$0xff]
    %v89 = vld [vmem:[%s0 + $0x1d0] sm:$0xff]
    %v90 = vld [vmem:[%s0 + $0x1d8] sm:$0xff]
    %v91 = vld [vmem:[%s0 + $0x1e0] sm:$0xff]
    %v92 = vld [vmem:[%s0 + $0x1e8] sm:$0xff]
    %v93 = vld [vmem:[%s0 + $0x1f0] sm:$0xff]
    %v94 = vld [vmem:[%s0 + $0x1f8] sm:$0xff]
    %v95 = vld [vmem:[%s0 + $0x200] sm:$0xff]
    %v96 = vld [vmem:[%s0 + $0x208] sm:$0xff]
    %v97 = vld [vmem:[%s0 + $0x210] sm:$0xff]
    %v98 = vld [vmem:[%s0 + $0x218] sm:$0xff]
    %v99 = vld [vmem:[%s0 + $0x220] sm:$0xff]
    %v100 = vld [vmem:[%s0 + $0x228] sm:$0xff]
    %v101 = vld [vmem:[%s0 + $0x230] sm:$0xff]
    %v102 = vld [vmem:[%s0 + $0x238] sm:$0xff]
    %v103 = vld [vmem:[%s0 + $0x240] sm:$0xff]
    %v104 = vld [vmem:[%s0 + $0x248] sm:$0xff]
    %v105 = vld [vmem:[%s0 + $0x250] sm:$0xff]
    %v106 = vld [vmem:[%s0 + $0x258] sm:$0xff]
    %v107 = vld [vmem:[%s0 + $0x260] sm:$0xff]
    %v108 = vld [vmem:[%s0 + $0x268] sm:$0xff]
    %v109 = vld [vmem:[%s0 + $0x270] sm:$0xff]
    %v110 = vld [vmem:[%s0 + $0x278] sm:$0xff]
    %v111 = vld [vmem:[%s0 + $0x280] sm:$0xff]
    %v112 = vld [vmem:[%s0 + $0x288] sm:$0xff]
    %v113 = vld [vmem:[%s0 + $0x290] sm:$0xff]
    %v114 = vld [vmem:[%s0 + $0x298] sm:$0xff]
    %v115 = vld [vmem:[%s0 + $0x2a0] sm:$0xff]
    %v116 = vld [vmem:[%s0 + $0x2a8] sm:$0xff]
    %v117 = vld [vmem:[%s0 + $0x2b0] sm:$0xff]
    %v118 = vld [vmem:[%s0 + $0x2b8] sm:$0xff]
    %v119 = vld [vmem:[%s0 + $0x2c0] sm:$0xff]
    %v120 = vld [vmem:[%s0 + $0x2c8] sm:$0xff]
    %v121 = vld [vmem:[%s0 + $0x2d0] sm:$0xff]
    %v122 = vld [vmem:[%s0 + $0x2d8] sm:$0xff]
    %v123 = vld [vmem:[%s0 + $0x2e0] sm:$0xff]
    %v124 = vld [vmem:[%s0 + $0x2e8] sm:$0xff]
    %v125 = vld [vmem:[%s0 + $0x2f0] sm:$0xff]
    %v126 = vld [vmem:[%s0 + $0x2f8] sm:$0xff]
    %v127 = vld [vmem:[%s0 + $0x300] sm:$0xff]
    %v128 = vld [vmem:[%s0 + $0x308] sm:$0xff]
    %v129 = vld [vmem:[%s0 + $0x310] sm:$0xff]
    %v130 = vld [vmem:[%s0 + $0x318] sm:$0xff]
    %v131 = vld [vmem:[%s0 + $0x320] sm:$0xff]
    %v132 = vld [vmem:[%s0 + $0x328] sm:$0xff]
    %v133 = vld [vmem:[%s0 + $0x330] sm:$0xff]
    %v134 = vld [vmem:[%s0 + $0x338] sm:$0xff]
    %v135 = vld [vmem:[%s0 + $0x340] sm:$0xff]
    %v136 = vld [vmem:[%s0 + $0x348] sm:$0xff]
    %v137 = vld [vmem:[%s0 + $0x350] sm:$0xff]
    %v138 = vld [vmem:[%s0 + $0x358] sm:$0xff]
    %v139 = vld [vmem:[%s0 + $0x360] sm:$0xff]
    %v140 = vld [vmem:[%s0 + $0x368] sm:$0xff]
    %v141 = vld [vmem:[%s0 + $0x370] sm:$0xff]
    %v142 = vld [vmem:[%s0 + $0x378] sm:$0xff]
    %v143 = vld [vmem:[%s0 + $0x380] sm:$0xff]
    %v144 = vld [vmem:[%s0 + $0x388] sm:$0xff]
    %v145 = vld [vmem:[%s0 + $0x390] sm:$0xff]
    %v146 = vld [vmem:[%s0 + $0x398] sm:$0xff]
    %v147 = vld [vmem:[%s0 + $0x3a0] sm:$0xff]
    %v148 = vld [vmem:[%s0 + $0x3a8] sm:$0xff]
    %v149 = vld [vmem:[%s0 + $0x3b0] sm:$0xff]
    %v150 = vld [vmem:[%s0 + $0x3b8] sm:$0xff]
    %v151 = vld [vmem:[%s0 + $0x3c0] sm:$0xff]
    %v152 = vld [vmem:[%s0 + $0x3c8] sm:$0xff]
    %v153 = vld [vmem:[%s0 + $0x3d0] sm:$0xff]
    %v154 = vld [vmem:[%s0 + $0x3d8] sm:$0xff]
    %v155 = vld [vmem:[%s0 + $0x3e0] sm:$0xff]
    %v156 = vld [vmem:[%s0 + $0x3e8] sm:$0xff]
    %v157 = vld [vmem:[%s0 + $0x3f0] sm:$0xff]
    %v158 = vld [vmem:[%s0 + $0x3f8] sm:$0xff]
    %v159 = vld [vmem:[%s1] sm:$0xff]
    %v160 = vld [vmem:[%s2] sm:$0x1]
    %v162 = vperm.slane %v160, 0
    %vm164 = vcmask 64512
    %v166 = vsel %vm164, %v31, 0
    %v169 = vsel %vm164, %v32, 0
    %v172 = vsel %vm164, %v33, 0
    %v175 = vsel %vm164, %v34, 0
    %v178 = vsel %vm164, %v35, 0
    %v181 = vsel %vm164, %v36, 0
    %v184 = vsel %vm164, %v37, 0
    %v187 = vsel %vm164, %v38, 0
    %v190 = vsel %vm164, %v39, 0
    %v193 = vsel %vm164, %v40, 0
    %v196 = vsel %vm164, %v41, 0
    %v199 = vsel %vm164, %v42, 0
    %v202 = vsel %vm164, %v43, 0
    %v205 = vsel %vm164, %v44, 0
    %v208 = vsel %vm164, %v45, 0
    %v211 = vsel %vm164, %v46, 0
    %v214 = vsel %vm164, %v47, 0
    %v217 = vsel %vm164, %v48, 0
    %v220 = vsel %vm164, %v49, 0
    %v223 = vsel %vm164, %v50, 0
    %v226 = vsel %vm164, %v51, 0
    %v229 = vsel %vm164, %v52, 0
    %v232 = vsel %vm164, %v53, 0
    %v235 = vsel %vm164, %v54, 0
    %v238 = vsel %vm164, %v55, 0
    %v241 = vsel %vm164, %v56, 0
    %v244 = vsel %vm164, %v57, 0
    %v247 = vsel %vm164, %v58, 0
    %v250 = vsel %vm164, %v59, 0
    %v253 = vsel %vm164, %v60, 0
    %v256 = vsel %vm164, %v61, 0
    %v259 = vsel %vm164, %v62, 0
    %v262 = vsel %vm164, %v63, 0
    %v265 = vsel %vm164, %v64, 0
    %v268 = vsel %vm164, %v65, 0
    %v271 = vsel %vm164, %v66, 0
    %v274 = vsel %vm164, %v67, 0
    %v277 = vsel %vm164, %v68, 0
    %v280 = vsel %vm164, %v69, 0
    %v283 = vsel %vm164, %v70, 0
    %v286 = vsel %vm164, %v71, 0
    %v289 = vsel %vm164, %v72, 0
    %v292 = vsel %vm164, %v73, 0
    %v295 = vsel %vm164, %v74, 0
    %v298 = vsel %vm164, %v75, 0
    %v301 = vsel %vm164, %v76, 0
    %v304 = vsel %vm164, %v77, 0
    %v307 = vsel %vm164, %v78, 0
    %v310 = vsel %vm164, %v79, 0
    %v313 = vsel %vm164, %v80, 0
    %v316 = vsel %vm164, %v81, 0
    %v319 = vsel %vm164, %v82, 0
    %v322 = vsel %vm164, %v83, 0
    %v325 = vsel %vm164, %v84, 0
    %v328 = vsel %vm164, %v85, 0
    %v331 = vsel %vm164, %v86, 0
    %v334 = vsel %vm164, %v87, 0
    %v337 = vsel %vm164, %v88, 0
    %v340 = vsel %vm164, %v89, 0
    %v343 = vsel %vm164, %v90, 0
    %v346 = vsel %vm164, %v91, 0
    %v349 = vsel %vm164, %v92, 0
    %v352 = vsel %vm164, %v93, 0
    %v355 = vsel %vm164, %v94, 0
    %v358 = vsel %vm164, %v95, 0
    %v361 = vsel %vm164, %v96, 0
    %v364 = vsel %vm164, %v97, 0
    %v367 = vsel %vm164, %v98, 0
    %v370 = vsel %vm164, %v99, 0
    %v373 = vsel %vm164, %v100, 0
    %v376 = vsel %vm164, %v101, 0
    %v379 = vsel %vm164, %v102, 0
    %v382 = vsel %vm164, %v103, 0
    %v385 = vsel %vm164, %v104, 0
    %v388 = vsel %vm164, %v105, 0
    %v391 = vsel %vm164, %v106, 0
    %v394 = vsel %vm164, %v107, 0
    %v397 = vsel %vm164, %v108, 0
    %v400 = vsel %vm164, %v109, 0
    %v403 = vsel %vm164, %v110, 0
    %v406 = vsel %vm164, %v111, 0
    %v409 = vsel %vm164, %v112, 0
    %v412 = vsel %vm164, %v113, 0
    %v415 = vsel %vm164, %v114, 0
    %v418 = vsel %vm164, %v115, 0
    %v421 = vsel %vm164, %v116, 0
    %v424 = vsel %vm164, %v117, 0
    %v427 = vsel %vm164, %v118, 0
    %v430 = vsel %vm164, %v119, 0
    %v433 = vsel %vm164, %v120, 0
    %v436 = vsel %vm164, %v121, 0
    %v439 = vsel %vm164, %v122, 0
    %v442 = vsel %vm164, %v123, 0
    %v445 = vsel %vm164, %v124, 0
    %v448 = vsel %vm164, %v125, 0
    %v451 = vsel %vm164, %v126, 0
    %v454 = vsel %vm164, %v127, 0
    %v457 = vsel %vm164, %v128, 0
    %v460 = vsel %vm164, %v129, 0
    %v463 = vsel %vm164, %v130, 0
    %v466 = vsel %vm164, %v131, 0
    %v469 = vsel %vm164, %v132, 0
    %v472 = vsel %vm164, %v133, 0
    %v475 = vsel %vm164, %v134, 0
    %v478 = vsel %vm164, %v135, 0
    %v481 = vsel %vm164, %v136, 0
    %v484 = vsel %vm164, %v137, 0
    %v487 = vsel %vm164, %v138, 0
    %v490 = vsel %vm164, %v139, 0
    %v493 = vsel %vm164, %v140, 0
    %v496 = vsel %vm164, %v141, 0
    %v499 = vsel %vm164, %v142, 0
    %v502 = vsel %vm164, %v143, 0
    %v505 = vsel %vm164, %v144, 0
    %v508 = vsel %vm164, %v145, 0
    %v511 = vsel %vm164, %v146, 0
    %v514 = vsel %vm164, %v147, 0
    %v517 = vsel %vm164, %v148, 0
    %v520 = vsel %vm164, %v149, 0
    %v523 = vsel %vm164, %v150, 0
    %v526 = vsel %vm164, %v151, 0
    %v529 = vsel %vm164, %v152, 0
    %v532 = vsel %vm164, %v153, 0
    %v535 = vsel %vm164, %v154, 0
    %v538 = vsel %vm164, %v155, 0
    %v541 = vsel %vm164, %v156, 0
    %v544 = vsel %vm164, %v157, 0
    %v547 = vsel %vm164, %v158, 0
    %549 = vmatpush.msra.mxu0 0.0
    %550 = vmatpush.msra.mxu0 0.0
    %551 = vmatpush.msra.mxu0 0.0
    %552 = vmatpush.msra.mxu0 0.0
    %553 = vmatpush.msra.mxu0 0.0
    %554 = vmatpush.msra.mxu0 0.0
    %555 = vmatpush.msra.mxu0 0.0
    %556 = vmatpush.msra.mxu0 0.0
    %557 = vmatpush.msra.mxu0 0.0
    %558 = vmatpush.msra.mxu0 0.0
    %559 = vmatpush.msra.mxu0 0.0
    %560 = vmatpush.msra.mxu0 0.0
    %561 = vmatpush.msra.mxu0 0.0
    %562 = vmatpush.msra.mxu0 0.0
    %563 = vmatpush.msra.mxu0 0.0
    %564 = vmatpush.msra.mxu0 %v159
    %565 = vmatmul.f32.gmra.mxu0 %v166
    %v566 = vpop.f32.mrf.mxu0
    %v567 = vadd.f32 %v162, %v566
    %568 = vmatmul.f32.gmra.mxu0 %v169
    %v569 = vpop.f32.mrf.mxu0
    %v570 = vadd.f32 %v162, %v569
    %571 = vmatmul.f32.gmra.mxu0 %v172
    %v572 = vpop.f32.mrf.mxu0
    %v573 = vadd.f32 %v162, %v572
    %574 = vmatmul.f32.gmra.mxu0 %v175
    %v575 = vpop.f32.mrf.mxu0
    %v576 = vadd.f32 %v162, %v575
    %577 = vmatmul.f32.gmra.mxu0 %v178
    %v578 = vpop.f32.mrf.mxu0
    %v579 = vadd.f32 %v162, %v578
    %580 = vmatmul.f32.gmra.mxu0 %v181
    %v581 = vpop.f32.mrf.mxu0
    %v582 = vadd.f32 %v162, %v581
    %583 = vmatmul.f32.gmra.mxu0 %v184
    %v584 = vpop.f32.mrf.mxu0
    %v585 = vadd.f32 %v162, %v584
    %586 = vmatmul.f32.gmra.mxu0 %v187
    %v587 = vpop.f32.mrf.mxu0
    %v588 = vadd.f32 %v162, %v587
    %589 = vmatmul.f32.gmra.mxu0 %v190
    %v590 = vpop.f32.mrf.mxu0
    %v591 = vadd.f32 %v162, %v590
    %592 = vmatmul.f32.gmra.mxu0 %v193
    %v593 = vpop.f32.mrf.mxu0
    %v594 = vadd.f32 %v162, %v593
    %595 = vmatmul.f32.gmra.mxu0 %v196
    %v596 = vpop.f32.mrf.mxu0
    %v597 = vadd.f32 %v162, %v596
    %598 = vmatmul.f32.gmra.mxu0 %v199
    %v599 = vpop.f32.mrf.mxu0
    %v600 = vadd.f32 %v162, %v599
    %601 = vmatmul.f32.gmra.mxu0 %v202
    %v602 = vpop.f32.mrf.mxu0
    %v603 = vadd.f32 %v162, %v602
    %604 = vmatmul.f32.gmra.mxu0 %v205
    %v605 = vpop.f32.mrf.mxu0
    %v606 = vadd.f32 %v162, %v605
    %607 = vmatmul.f32.gmra.mxu0 %v208
    %v608 = vpop.f32.mrf.mxu0
    %v609 = vadd.f32 %v162, %v608
    %610 = vmatmul.f32.gmra.mxu0 %v211
    %v611 = vpop.f32.mrf.mxu0
    %v612 = vadd.f32 %v162, %v611
    %613 = vmatmul.f32.gmra.mxu0 %v214
    %v614 = vpop.f32.mrf.mxu0
    %v615 = vadd.f32 %v162, %v614
    %616 = vmatmul.f32.gmra.mxu0 %v217
    %v617 = vpop.f32.mrf.mxu0
    %v618 = vadd.f32 %v162, %v617
    %619 = vmatmul.f32.gmra.mxu0 %v220
    %v620 = vpop.f32.mrf.mxu0
    %v621 = vadd.f32 %v162, %v620
    %622 = vmatmul.f32.gmra.mxu0 %v223
    %v623 = vpop.f32.mrf.mxu0
    %v624 = vadd.f32 %v162, %v623
    %625 = vmatmul.f32.gmra.mxu0 %v226
    %v626 = vpop.f32.mrf.mxu0
    %v627 = vadd.f32 %v162, %v626
    %628 = vmatmul.f32.gmra.mxu0 %v229
    %v629 = vpop.f32.mrf.mxu0
    %v630 = vadd.f32 %v162, %v629
    %631 = vmatmul.f32.gmra.mxu0 %v232
    %v632 = vpop.f32.mrf.mxu0
    %v633 = vadd.f32 %v162, %v632
    %634 = vmatmul.f32.gmra.mxu0 %v235
    %v635 = vpop.f32.mrf.mxu0
    %v636 = vadd.f32 %v162, %v635
    %637 = vmatmul.f32.gmra.mxu0 %v238
    %v638 = vpop.f32.mrf.mxu0
    %v639 = vadd.f32 %v162, %v638
    %640 = vmatmul.f32.gmra.mxu0 %v241
    %v641 = vpop.f32.mrf.mxu0
    %v642 = vadd.f32 %v162, %v641
    %643 = vmatmul.f32.gmra.mxu0 %v244
    %v644 = vpop.f32.mrf.mxu0
    %v645 = vadd.f32 %v162, %v644
    %646 = vmatmul.f32.gmra.mxu0 %v247
    %v647 = vpop.f32.mrf.mxu0
    %v648 = vadd.f32 %v162, %v647
    %649 = vmatmul.f32.gmra.mxu0 %v250
    %v650 = vpop.f32.mrf.mxu0
    %v651 = vadd.f32 %v162, %v650
    %652 = vmatmul.f32.gmra.mxu0 %v253
    %v653 = vpop.f32.mrf.mxu0
    %v654 = vadd.f32 %v162, %v653
    %655 = vmatmul.f32.gmra.mxu0 %v256
    %v656 = vpop.f32.mrf.mxu0
    %v657 = vadd.f32 %v162, %v656
    %658 = vmatmul.f32.gmra.mxu0 %v259
    %v659 = vpop.f32.mrf.mxu0
    %v660 = vadd.f32 %v162, %v659
    %661 = vmatmul.f32.gmra.mxu0 %v262
    %v662 = vpop.f32.mrf.mxu0
    %v663 = vadd.f32 %v162, %v662
    %664 = vmatmul.f32.gmra.mxu0 %v265
    %v665 = vpop.f32.mrf.mxu0
    %v666 = vadd.f32 %v162, %v665
    %667 = vmatmul.f32.gmra.mxu0 %v268
    %v668 = vpop.f32.mrf.mxu0
    %v669 = vadd.f32 %v162, %v668
    %670 = vmatmul.f32.gmra.mxu0 %v271
    %v671 = vpop.f32.mrf.mxu0
    %v672 = vadd.f32 %v162, %v671
    %673 = vmatmul.f32.gmra.mxu0 %v274
    %v674 = vpop.f32.mrf.mxu0
    %v675 = vadd.f32 %v162, %v674
    %676 = vmatmul.f32.gmra.mxu0 %v277
    %v677 = vpop.f32.mrf.mxu0
    %v678 = vadd.f32 %v162, %v677
    %679 = vmatmul.f32.gmra.mxu0 %v280
    %v680 = vpop.f32.mrf.mxu0
    %v681 = vadd.f32 %v162, %v680
    %682 = vmatmul.f32.gmra.mxu0 %v283
    %v683 = vpop.f32.mrf.mxu0
    %v684 = vadd.f32 %v162, %v683
    %685 = vmatmul.f32.gmra.mxu0 %v286
    %v686 = vpop.f32.mrf.mxu0
    %v687 = vadd.f32 %v162, %v686
    %688 = vmatmul.f32.gmra.mxu0 %v289
    %v689 = vpop.f32.mrf.mxu0
    %v690 = vadd.f32 %v162, %v689
    %691 = vmatmul.f32.gmra.mxu0 %v292
    %v692 = vpop.f32.mrf.mxu0
    %v693 = vadd.f32 %v162, %v692
    %694 = vmatmul.f32.gmra.mxu0 %v295
    %v695 = vpop.f32.mrf.mxu0
    %v696 = vadd.f32 %v162, %v695
    %697 = vmatmul.f32.gmra.mxu0 %v298
    %v698 = vpop.f32.mrf.mxu0
    %v699 = vadd.f32 %v162, %v698
    %700 = vmatmul.f32.gmra.mxu0 %v301
    %v701 = vpop.f32.mrf.mxu0
    %v702 = vadd.f32 %v162, %v701
    %703 = vmatmul.f32.gmra.mxu0 %v304
    %v704 = vpop.f32.mrf.mxu0
    %v705 = vadd.f32 %v162, %v704
    %706 = vmatmul.f32.gmra.mxu0 %v307
    %v707 = vpop.f32.mrf.mxu0
    %v708 = vadd.f32 %v162, %v707
    %709 = vmatmul.f32.gmra.mxu0 %v310
    %v710 = vpop.f32.mrf.mxu0
    %v711 = vadd.f32 %v162, %v710
    %712 = vmatmul.f32.gmra.mxu0 %v313
    %v713 = vpop.f32.mrf.mxu0
    %v714 = vadd.f32 %v162, %v713
    %715 = vmatmul.f32.gmra.mxu0 %v316
    %v716 = vpop.f32.mrf.mxu0
    %v717 = vadd.f32 %v162, %v716
    %718 = vmatmul.f32.gmra.mxu0 %v319
    %v719 = vpop.f32.mrf.mxu0
    %v720 = vadd.f32 %v162, %v719
    %721 = vmatmul.f32.gmra.mxu0 %v322
    %v722 = vpop.f32.mrf.mxu0
    %v723 = vadd.f32 %v162, %v722
    %724 = vmatmul.f32.gmra.mxu0 %v325
    %v725 = vpop.f32.mrf.mxu0
    %v726 = vadd.f32 %v162, %v725
    %727 = vmatmul.f32.gmra.mxu0 %v328
    %v728 = vpop.f32.mrf.mxu0
    %v729 = vadd.f32 %v162, %v728
    %730 = vmatmul.f32.gmra.mxu0 %v331
    %v731 = vpop.f32.mrf.mxu0
    %v732 = vadd.f32 %v162, %v731
    %733 = vmatmul.f32.gmra.mxu0 %v334
    %v734 = vpop.f32.mrf.mxu0
    %v735 = vadd.f32 %v162, %v734
    %736 = vmatmul.f32.gmra.mxu0 %v337
    %v737 = vpop.f32.mrf.mxu0
    %v738 = vadd.f32 %v162, %v737
    %739 = vmatmul.f32.gmra.mxu0 %v340
    %v740 = vpop.f32.mrf.mxu0
    %v741 = vadd.f32 %v162, %v740
    %742 = vmatmul.f32.gmra.mxu0 %v343
    %v743 = vpop.f32.mrf.mxu0
    %v744 = vadd.f32 %v162, %v743
    %745 = vmatmul.f32.gmra.mxu0 %v346
    %v746 = vpop.f32.mrf.mxu0
    %v747 = vadd.f32 %v162, %v746
    %748 = vmatmul.f32.gmra.mxu0 %v349
    %v749 = vpop.f32.mrf.mxu0
    %v750 = vadd.f32 %v162, %v749
    %751 = vmatmul.f32.gmra.mxu0 %v352
    %v752 = vpop.f32.mrf.mxu0
    %v753 = vadd.f32 %v162, %v752
    %754 = vmatmul.f32.gmra.mxu0 %v355
    %v755 = vpop.f32.mrf.mxu0
    %v756 = vadd.f32 %v162, %v755
    %757 = vmatmul.f32.gmra.mxu0 %v358
    %v758 = vpop.f32.mrf.mxu0
    %v759 = vadd.f32 %v162, %v758
    %760 = vmatmul.f32.gmra.mxu0 %v361
    %v761 = vpop.f32.mrf.mxu0
    %v762 = vadd.f32 %v162, %v761
    %763 = vmatmul.f32.gmra.mxu0 %v364
    %v764 = vpop.f32.mrf.mxu0
    %v765 = vadd.f32 %v162, %v764
    %766 = vmatmul.f32.gmra.mxu0 %v367
    %v767 = vpop.f32.mrf.mxu0
    %v768 = vadd.f32 %v162, %v767
    %769 = vmatmul.f32.gmra.mxu0 %v370
    %v770 = vpop.f32.mrf.mxu0
    %v771 = vadd.f32 %v162, %v770
    %772 = vmatmul.f32.gmra.mxu0 %v373
    %v773 = vpop.f32.mrf.mxu0
    %v774 = vadd.f32 %v162, %v773
    %775 = vmatmul.f32.gmra.mxu0 %v376
    %v776 = vpop.f32.mrf.mxu0
    %v777 = vadd.f32 %v162, %v776
    %778 = vmatmul.f32.gmra.mxu0 %v379
    %v779 = vpop.f32.mrf.mxu0
    %v780 = vadd.f32 %v162, %v779
    %781 = vmatmul.f32.gmra.mxu0 %v382
    %v782 = vpop.f32.mrf.mxu0
    %v783 = vadd.f32 %v162, %v782
    %784 = vmatmul.f32.gmra.mxu0 %v385
    %v785 = vpop.f32.mrf.mxu0
    %v786 = vadd.f32 %v162, %v785
    %787 = vmatmul.f32.gmra.mxu0 %v388
    %v788 = vpop.f32.mrf.mxu0
    %v789 = vadd.f32 %v162, %v788
    %790 = vmatmul.f32.gmra.mxu0 %v391
    %v791 = vpop.f32.mrf.mxu0
    %v792 = vadd.f32 %v162, %v791
    %793 = vmatmul.f32.gmra.mxu0 %v394
    %v794 = vpop.f32.mrf.mxu0
    %v795 = vadd.f32 %v162, %v794
    %796 = vmatmul.f32.gmra.mxu0 %v397
    %v797 = vpop.f32.mrf.mxu0
    %v798 = vadd.f32 %v162, %v797
    %799 = vmatmul.f32.gmra.mxu0 %v400
    %v800 = vpop.f32.mrf.mxu0
    %v801 = vadd.f32 %v162, %v800
    %802 = vmatmul.f32.gmra.mxu0 %v403
    %v803 = vpop.f32.mrf.mxu0
    %v804 = vadd.f32 %v162, %v803
    %805 = vmatmul.f32.gmra.mxu0 %v406
    %v806 = vpop.f32.mrf.mxu0
    %v807 = vadd.f32 %v162, %v806
    %808 = vmatmul.f32.gmra.mxu0 %v409
    %v809 = vpop.f32.mrf.mxu0
    %v810 = vadd.f32 %v162, %v809
    %811 = vmatmul.f32.gmra.mxu0 %v412
    %v812 = vpop.f32.mrf.mxu0
    %v813 = vadd.f32 %v162, %v812
    %814 = vmatmul.f32.gmra.mxu0 %v415
    %v815 = vpop.f32.mrf.mxu0
    %v816 = vadd.f32 %v162, %v815
    %817 = vmatmul.f32.gmra.mxu0 %v418
    %v818 = vpop.f32.mrf.mxu0
    %v819 = vadd.f32 %v162, %v818
    %820 = vmatmul.f32.gmra.mxu0 %v421
    %v821 = vpop.f32.mrf.mxu0
    %v822 = vadd.f32 %v162, %v821
    %823 = vmatmul.f32.gmra.mxu0 %v424
    %v824 = vpop.f32.mrf.mxu0
    %v825 = vadd.f32 %v162, %v824
    %826 = vmatmul.f32.gmra.mxu0 %v427
    %v827 = vpop.f32.mrf.mxu0
    %v828 = vadd.f32 %v162, %v827
    %829 = vmatmul.f32.gmra.mxu0 %v430
    %v830 = vpop.f32.mrf.mxu0
    %v831 = vadd.f32 %v162, %v830
    %832 = vmatmul.f32.gmra.mxu0 %v433
    %v833 = vpop.f32.mrf.mxu0
    %v834 = vadd.f32 %v162, %v833
    %835 = vmatmul.f32.gmra.mxu0 %v436
    %v836 = vpop.f32.mrf.mxu0
    %v837 = vadd.f32 %v162, %v836
    %838 = vmatmul.f32.gmra.mxu0 %v439
    %v839 = vpop.f32.mrf.mxu0
    %v840 = vadd.f32 %v162, %v839
    %841 = vmatmul.f32.gmra.mxu0 %v442
    %v842 = vpop.f32.mrf.mxu0
    %v843 = vadd.f32 %v162, %v842
    %844 = vmatmul.f32.gmra.mxu0 %v445
    %v845 = vpop.f32.mrf.mxu0
    %v846 = vadd.f32 %v162, %v845
    %847 = vmatmul.f32.gmra.mxu0 %v448
    %v848 = vpop.f32.mrf.mxu0
    %v849 = vadd.f32 %v162, %v848
    %850 = vmatmul.f32.gmra.mxu0 %v451
    %v851 = vpop.f32.mrf.mxu0
    %v852 = vadd.f32 %v162, %v851
    %853 = vmatmul.f32.gmra.mxu0 %v454
    %v854 = vpop.f32.mrf.mxu0
    %v855 = vadd.f32 %v162, %v854
    %856 = vmatmul.f32.gmra.mxu0 %v457
    %v857 = vpop.f32.mrf.mxu0
    %v858 = vadd.f32 %v162, %v857
    %859 = vmatmul.f32.gmra.mxu0 %v460
    %v860 = vpop.f32.mrf.mxu0
    %v861 = vadd.f32 %v162, %v860
    %862 = vmatmul.f32.gmra.mxu0 %v463
    %v863 = vpop.f32.mrf.mxu0
    %v864 = vadd.f32 %v162, %v863
    %865 = vmatmul.f32.gmra.mxu0 %v466
    %v866 = vpop.f32.mrf.mxu0
    %v867 = vadd.f32 %v162, %v866
    %868 = vmatmul.f32.gmra.mxu0 %v469
    %v869 = vpop.f32.mrf.mxu0
    %v870 = vadd.f32 %v162, %v869
    %871 = vmatmul.f32.gmra.mxu0 %v472
    %v872 = vpop.f32.mrf.mxu0
    %v873 = vadd.f32 %v162, %v872
    %874 = vmatmul.f32.gmra.mxu0 %v475
    %v875 = vpop.f32.mrf.mxu0
    %v876 = vadd.f32 %v162, %v875
    %877 = vmatmul.f32.gmra.mxu0 %v478
    %v878 = vpop.f32.mrf.mxu0
    %v879 = vadd.f32 %v162, %v878
    %880 = vmatmul.f32.gmra.mxu0 %v481
    %v881 = vpop.f32.mrf.mxu0
    %v882 = vadd.f32 %v162, %v881
    %883 = vmatmul.f32.gmra.mxu0 %v484
    %v884 = vpop.f32.mrf.mxu0
    %v885 = vadd.f32 %v162, %v884
    %886 = vmatmul.f32.gmra.mxu0 %v487
    %v887 = vpop.f32.mrf.mxu0
    %v888 = vadd.f32 %v162, %v887
    %889 = vmatmul.f32.gmra.mxu0 %v490
    %v890 = vpop.f32.mrf.mxu0
    %v891 = vadd.f32 %v162, %v890
    %892 = vmatmul.f32.gmra.mxu0 %v493
    %v893 = vpop.f32.mrf.mxu0
    %v894 = vadd.f32 %v162, %v893
    %895 = vmatmul.f32.gmra.mxu0 %v496
    %v896 = vpop.f32.mrf.mxu0
    %v897 = vadd.f32 %v162, %v896
    %898 = vmatmul.f32.gmra.mxu0 %v499
    %v899 = vpop.f32.mrf.mxu0
    %v900 = vadd.f32 %v162, %v899
    %901 = vmatmul.f32.gmra.mxu0 %v502
    %v902 = vpop.f32.mrf.mxu0
    %v903 = vadd.f32 %v162, %v902
    %904 = vmatmul.f32.gmra.mxu0 %v505
    %v905 = vpop.f32.mrf.mxu0
    %v906 = vadd.f32 %v162, %v905
    %907 = vmatmul.f32.gmra.mxu0 %v508
    %v908 = vpop.f32.mrf.mxu0
    %v909 = vadd.f32 %v162, %v908
    %910 = vmatmul.f32.gmra.mxu0 %v511
    %v911 = vpop.f32.mrf.mxu0
    %v912 = vadd.f32 %v162, %v911
    %913 = vmatmul.f32.gmra.mxu0 %v514
    %v914 = vpop.f32.mrf.mxu0
    %v915 = vadd.f32 %v162, %v914
    %916 = vmatmul.f32.gmra.mxu0 %v517
    %v917 = vpop.f32.mrf.mxu0
    %v918 = vadd.f32 %v162, %v917
    %919 = vmatmul.f32.gmra.mxu0 %v520
    %v920 = vpop.f32.mrf.mxu0
    %v921 = vadd.f32 %v162, %v920
    %922 = vmatmul.f32.gmra.mxu0 %v523
    %v923 = vpop.f32.mrf.mxu0
    %v924 = vadd.f32 %v162, %v923
    %925 = vmatmul.f32.gmra.mxu0 %v526
    %v926 = vpop.f32.mrf.mxu0
    %v927 = vadd.f32 %v162, %v926
    %928 = vmatmul.f32.gmra.mxu0 %v529
    %v929 = vpop.f32.mrf.mxu0
    %v930 = vadd.f32 %v162, %v929
    %931 = vmatmul.f32.gmra.mxu0 %v532
    %v932 = vpop.f32.mrf.mxu0
    %v933 = vadd.f32 %v162, %v932
    %934 = vmatmul.f32.gmra.mxu0 %v535
    %v935 = vpop.f32.mrf.mxu0
    %v936 = vadd.f32 %v162, %v935
    %937 = vmatmul.f32.gmra.mxu0 %v538
    %v938 = vpop.f32.mrf.mxu0
    %v939 = vadd.f32 %v162, %v938
    %940 = vmatmul.f32.gmra.mxu0 %v541
    %v941 = vpop.f32.mrf.mxu0
    %v942 = vadd.f32 %v162, %v941
    %943 = vmatmul.f32.gmra.mxu0 %v544
    %v944 = vpop.f32.mrf.mxu0
    %v945 = vadd.f32 %v162, %v944
    %946 = vmatmul.f32.gmra.mxu0 %v547
    %v947 = vpop.f32.mrf.mxu0
    %v948 = vadd.f32 %v162, %v947
    %949 = vdwg.mxu0
    %v950 = vmax.f32 %v567, 0.0
    %v951 = vmax.f32 %v570, 0.0
    %v952 = vmax.f32 %v573, 0.0
    %v953 = vmax.f32 %v576, 0.0
    %v954 = vmax.f32 %v579, 0.0
    %v955 = vmax.f32 %v582, 0.0
    %v956 = vmax.f32 %v585, 0.0
    %v957 = vmax.f32 %v588, 0.0
    %v958 = vmax.f32 %v591, 0.0
    %v959 = vmax.f32 %v594, 0.0
    %v960 = vmax.f32 %v597, 0.0
    %v961 = vmax.f32 %v600, 0.0
    %v962 = vmax.f32 %v603, 0.0
    %v963 = vmax.f32 %v606, 0.0
    %v964 = vmax.f32 %v609, 0.0
    %v965 = vmax.f32 %v612, 0.0
    %v966 = vmax.f32 %v615, 0.0
    %v967 = vmax.f32 %v618, 0.0
    %v968 = vmax.f32 %v621, 0.0
    %v969 = vmax.f32 %v624, 0.0
    %v970 = vmax.f32 %v627, 0.0
    %v971 = vmax.f32 %v630, 0.0
    %v972 = vmax.f32 %v633, 0.0
    %v973 = vmax.f32 %v636, 0.0
    %v974 = vmax.f32 %v639, 0.0
    %v975 = vmax.f32 %v642, 0.0
    %v976 = vmax.f32 %v645, 0.0
    %v977 = vmax.f32 %v648, 0.0
    %v978 = vmax.f32 %v651, 0.0
    %v979 = vmax.f32 %v654, 0.0
    %v980 = vmax.f32 %v657, 0.0
    %v981 = vmax.f32 %v660, 0.0
    %v982 = vmax.f32 %v663, 0.0
    %v983 = vmax.f32 %v666, 0.0
    %v984 = vmax.f32 %v669, 0.0
    %v985 = vmax.f32 %v672, 0.0
    %v986 = vmax.f32 %v675, 0.0
    %v987 = vmax.f32 %v678, 0.0
    %v988 = vmax.f32 %v681, 0.0
    %v989 = vmax.f32 %v684, 0.0
    %v990 = vmax.f32 %v687, 0.0
    %v991 = vmax.f32 %v690, 0.0
    %v992 = vmax.f32 %v693, 0.0
    %v993 = vmax.f32 %v696, 0.0
    %v994 = vmax.f32 %v699, 0.0
    %v995 = vmax.f32 %v702, 0.0
    %v996 = vmax.f32 %v705, 0.0
    %v997 = vmax.f32 %v708, 0.0
    %v998 = vmax.f32 %v711, 0.0
    %v999 = vmax.f32 %v714, 0.0
    %v1000 = vmax.f32 %v717, 0.0
    %v1001 = vmax.f32 %v720, 0.0
    %v1002 = vmax.f32 %v723, 0.0
    %v1003 = vmax.f32 %v726, 0.0
    %v1004 = vmax.f32 %v729, 0.0
    %v1005 = vmax.f32 %v732, 0.0
    %v1006 = vmax.f32 %v735, 0.0
    %v1007 = vmax.f32 %v738, 0.0
    %v1008 = vmax.f32 %v741, 0.0
    %v1009 = vmax.f32 %v744, 0.0
    %v1010 = vmax.f32 %v747, 0.0
    %v1011 = vmax.f32 %v750, 0.0
    %v1012 = vmax.f32 %v753, 0.0
    %v1013 = vmax.f32 %v756, 0.0
    %v1014 = vmax.f32 %v759, 0.0
    %v1015 = vmax.f32 %v762, 0.0
    %v1016 = vmax.f32 %v765, 0.0
    %v1017 = vmax.f32 %v768, 0.0
    %v1018 = vmax.f32 %v771, 0.0
    %v1019 = vmax.f32 %v774, 0.0
    %v1020 = vmax.f32 %v777, 0.0
    %v1021 = vmax.f32 %v780, 0.0
    %v1022 = vmax.f32 %v783, 0.0
    %v1023 = vmax.f32 %v786, 0.0
    %v1024 = vmax.f32 %v789, 0.0
    %v1025 = vmax.f32 %v792, 0.0
    %v1026 = vmax.f32 %v795, 0.0
    %v1027 = vmax.f32 %v798, 0.0
    %v1028 = vmax.f32 %v801, 0.0
    %v1029 = vmax.f32 %v804, 0.0
    %v1030 = vmax.f32 %v807, 0.0
    %v1031 = vmax.f32 %v810, 0.0
    %v1032 = vmax.f32 %v813, 0.0
    %v1033 = vmax.f32 %v816, 0.0
    %v1034 = vmax.f32 %v819, 0.0
    %v1035 = vmax.f32 %v822, 0.0
    %v1036 = vmax.f32 %v825, 0.0
    %v1037 = vmax.f32 %v828, 0.0
    %v1038 = vmax.f32 %v831, 0.0
    %v1039 = vmax.f32 %v834, 0.0
    %v1040 = vmax.f32 %v837, 0.0
    %v1041 = vmax.f32 %v840, 0.0
    %v1042 = vmax.f32 %v843, 0.0
    %v1043 = vmax.f32 %v846, 0.0
    %v1044 = vmax.f32 %v849, 0.0
    %v1045 = vmax.f32 %v852, 0.0
    %v1046 = vmax.f32 %v855, 0.0
    %v1047 = vmax.f32 %v858, 0.0
    %v1048 = vmax.f32 %v861, 0.0
    %v1049 = vmax.f32 %v864, 0.0
    %v1050 = vmax.f32 %v867, 0.0
    %v1051 = vmax.f32 %v870, 0.0
    %v1052 = vmax.f32 %v873, 0.0
    %v1053 = vmax.f32 %v876, 0.0
    %v1054 = vmax.f32 %v879, 0.0
    %v1055 = vmax.f32 %v882, 0.0
    %v1056 = vmax.f32 %v885, 0.0
    %v1057 = vmax.f32 %v888, 0.0
    %v1058 = vmax.f32 %v891, 0.0
    %v1059 = vmax.f32 %v894, 0.0
    %v1060 = vmax.f32 %v897, 0.0
    %v1061 = vmax.f32 %v900, 0.0
    %v1062 = vmax.f32 %v903, 0.0
    %v1063 = vmax.f32 %v906, 0.0
    %v1064 = vmax.f32 %v909, 0.0
    %v1065 = vmax.f32 %v912, 0.0
    %v1066 = vmax.f32 %v915, 0.0
    %v1067 = vmax.f32 %v918, 0.0
    %v1068 = vmax.f32 %v921, 0.0
    %v1069 = vmax.f32 %v924, 0.0
    %v1070 = vmax.f32 %v927, 0.0
    %v1071 = vmax.f32 %v930, 0.0
    %v1072 = vmax.f32 %v933, 0.0
    %v1073 = vmax.f32 %v936, 0.0
    %v1074 = vmax.f32 %v939, 0.0
    %v1075 = vmax.f32 %v942, 0.0
    %v1076 = vmax.f32 %v945, 0.0
    %v1077 = vmax.f32 %v948, 0.0
    %v1078 = vld [vmem:[%s3] sm:$0xff]
    %v1079 = vld [vmem:[%s3 + $0x8] sm:$0xff]
    %v1080 = vld [vmem:[%s3 + $0x10] sm:$0xff]
    %v1081 = vld [vmem:[%s3 + $0x18] sm:$0xff]
    %v1082 = vld [vmem:[%s4] sm:$0x1]
    %v1084 = vperm.slane %v1082, 0
    %vm1086 = vcmask 261120
    %v1088 = vsel %vm1086, %v950, 0
    %v1091 = vsel %vm1086, %v951, 0
    %v1094 = vsel %vm1086, %v952, 0
    %v1097 = vsel %vm1086, %v953, 0
    %v1100 = vsel %vm1086, %v954, 0
    %v1103 = vsel %vm1086, %v955, 0
    %v1106 = vsel %vm1086, %v956, 0
    %v1109 = vsel %vm1086, %v957, 0
    %v1112 = vsel %vm1086, %v958, 0
    %v1115 = vsel %vm1086, %v959, 0
    %v1118 = vsel %vm1086, %v960, 0
    %v1121 = vsel %vm1086, %v961, 0
    %v1124 = vsel %vm1086, %v962, 0
    %v1127 = vsel %vm1086, %v963, 0
    %v1130 = vsel %vm1086, %v964, 0
    %v1133 = vsel %vm1086, %v965, 0
    %v1136 = vsel %vm1086, %v966, 0
    %v1139 = vsel %vm1086, %v967, 0
    %v1142 = vsel %vm1086, %v968, 0
    %v1145 = vsel %vm1086, %v969, 0
    %v1148 = vsel %vm1086, %v970, 0
    %v1151 = vsel %vm1086, %v971, 0
    %v1154 = vsel %vm1086, %v972, 0
    %v1157 = vsel %vm1086, %v973, 0
    %v1160 = vsel %vm1086, %v974, 0
    %v1163 = vsel %vm1086, %v975, 0
    %v1166 = vsel %vm1086, %v976, 0
    %v1169 = vsel %vm1086, %v977, 0
    %v1172 = vsel %vm1086, %v978, 0
    %v1175 = vsel %vm1086, %v979, 0
    %v1178 = vsel %vm1086, %v980, 0
    %v1181 = vsel %vm1086, %v981, 0
    %v1184 = vsel %vm1086, %v982, 0
    %v1187 = vsel %vm1086, %v983, 0
    %v1190 = vsel %vm1086, %v984, 0
    %v1193 = vsel %vm1086, %v985, 0
    %v1196 = vsel %vm1086, %v986, 0
    %v1199 = vsel %vm1086, %v987, 0
    %v1202 = vsel %vm1086, %v988, 0
    %v1205 = vsel %vm1086, %v989, 0
    %v1208 = vsel %vm1086, %v990, 0
    %v1211 = vsel %vm1086, %v991, 0
    %v1214 = vsel %vm1086, %v992, 0
    %v1217 = vsel %vm1086, %v993, 0
    %v1220 = vsel %vm1086, %v994, 0
    %v1223 = vsel %vm1086, %v995, 0
    %v1226 = vsel %vm1086, %v996, 0
    %v1229 = vsel %vm1086, %v997, 0
    %v1232 = vsel %vm1086, %v998, 0
    %v1235 = vsel %vm1086, %v999, 0
    %v1238 = vsel %vm1086, %v1000, 0
    %v1241 = vsel %vm1086, %v1001, 0
    %v1244 = vsel %vm1086, %v1002, 0
    %v1247 = vsel %vm1086, %v1003, 0
    %v1250 = vsel %vm1086, %v1004, 0
    %v1253 = vsel %vm1086, %v1005, 0
    %v1256 = vsel %vm1086, %v1006, 0
    %v1259 = vsel %vm1086, %v1007, 0
    %v1262 = vsel %vm1086, %v1008, 0
    %v1265 = vsel %vm1086, %v1009, 0
    %v1268 = vsel %vm1086, %v1010, 0
    %v1271 = vsel %vm1086, %v1011, 0
    %v1274 = vsel %vm1086, %v1012, 0
    %v1277 = vsel %vm1086, %v1013, 0
    %v1280 = vsel %vm1086, %v1014, 0
    %v1283 = vsel %vm1086, %v1015, 0
    %v1286 = vsel %vm1086, %v1016, 0
    %v1289 = vsel %vm1086, %v1017, 0
    %v1292 = vsel %vm1086, %v1018, 0
    %v1295 = vsel %vm1086, %v1019, 0
    %v1298 = vsel %vm1086, %v1020, 0
    %v1301 = vsel %vm1086, %v1021, 0
    %v1304 = vsel %vm1086, %v1022, 0
    %v1307 = vsel %vm1086, %v1023, 0
    %v1310 = vsel %vm1086, %v1024, 0
    %v1313 = vsel %vm1086, %v1025, 0
    %v1316 = vsel %vm1086, %v1026, 0
    %v1319 = vsel %vm1086, %v1027, 0
    %v1322 = vsel %vm1086, %v1028, 0
    %v1325 = vsel %vm1086, %v1029, 0
    %v1328 = vsel %vm1086, %v1030, 0
    %v1331 = vsel %vm1086, %v1031, 0
    %v1334 = vsel %vm1086, %v1032, 0
    %v1337 = vsel %vm1086, %v1033, 0
    %v1340 = vsel %vm1086, %v1034, 0
    %v1343 = vsel %vm1086, %v1035, 0
    %v1346 = vsel %vm1086, %v1036, 0
    %v1349 = vsel %vm1086, %v1037, 0
    %v1352 = vsel %vm1086, %v1038, 0
    %v1355 = vsel %vm1086, %v1039, 0
    %v1358 = vsel %vm1086, %v1040, 0
    %v1361 = vsel %vm1086, %v1041, 0
    %v1364 = vsel %vm1086, %v1042, 0
    %v1367 = vsel %vm1086, %v1043, 0
    %v1370 = vsel %vm1086, %v1044, 0
    %v1373 = vsel %vm1086, %v1045, 0
    %v1376 = vsel %vm1086, %v1046, 0
    %v1379 = vsel %vm1086, %v1047, 0
    %v1382 = vsel %vm1086, %v1048, 0
    %v1385 = vsel %vm1086, %v1049, 0
    %v1388 = vsel %vm1086, %v1050, 0
    %v1391 = vsel %vm1086, %v1051, 0
    %v1394 = vsel %vm1086, %v1052, 0
    %v1397 = vsel %vm1086, %v1053, 0
    %v1400 = vsel %vm1086, %v1054, 0
    %v1403 = vsel %vm1086, %v1055, 0
    %v1406 = vsel %vm1086, %v1056, 0
    %v1409 = vsel %vm1086, %v1057, 0
    %v1412 = vsel %vm1086, %v1058, 0
    %v1415 = vsel %vm1086, %v1059, 0
    %v1418 = vsel %vm1086, %v1060, 0
    %v1421 = vsel %vm1086, %v1061, 0
    %v1424 = vsel %vm1086, %v1062, 0
    %v1427 = vsel %vm1086, %v1063, 0
    %v1430 = vsel %vm1086, %v1064, 0
    %v1433 = vsel %vm1086, %v1065, 0
    %v1436 = vsel %vm1086, %v1066, 0
    %v1439 = vsel %vm1086, %v1067, 0
    %v1442 = vsel %vm1086, %v1068, 0
    %v1445 = vsel %vm1086, %v1069, 0
    %v1448 = vsel %vm1086, %v1070, 0
    %v1451 = vsel %vm1086, %v1071, 0
    %v1454 = vsel %vm1086, %v1072, 0
    %v1457 = vsel %vm1086, %v1073, 0
    %v1460 = vsel %vm1086, %v1074, 0
    %v1463 = vsel %vm1086, %v1075, 0
    %v1466 = vsel %vm1086, %v1076, 0
    %v1469 = vsel %vm1086, %v1077, 0
    %1471 = vmatpush.msra.mxu0 0.0
    %1472 = vmatpush.msra.mxu0 0.0
    %1473 = vmatpush.msra.mxu0 0.0
    %1474 = vmatpush.msra.mxu0 0.0
    %1475 = vmatpush.msra.mxu0 0.0
    %1476 = vmatpush.msra.mxu0 0.0
    %1477 = vmatpush.msra.mxu0 0.0
    %1478 = vmatpush.msra.mxu0 0.0
    %1479 = vmatpush.msra.mxu0 0.0
    %1480 = vmatpush.msra.mxu0 0.0
    %1481 = vmatpush.msra.mxu0 0.0
    %1482 = vmatpush.msra.mxu0 0.0
    %1483 = vmatpush.msra.mxu0 %v1081
    %1484 = vmatpush.msra.mxu0 %v1080
    %1485 = vmatpush.msra.mxu0 %v1079
    %1486 = vmatpush.msra.mxu0 %v1078
    %1487 = vmatmul.f32.gmra.mxu0 %v1088
    %v1488 = vpop.f32.mrf.mxu0
    %v1489 = vadd.f32 %v1084, %v1488
    %1490 = vmatmul.f32.gmra.mxu0 %v1091
    %v1491 = vpop.f32.mrf.mxu0
    %v1492 = vadd.f32 %v1084, %v1491
    %1493 = vmatmul.f32.gmra.mxu0 %v1094
    %v1494 = vpop.f32.mrf.mxu0
    %v1495 = vadd.f32 %v1084, %v1494
    %1496 = vmatmul.f32.gmra.mxu0 %v1097
    %v1497 = vpop.f32.mrf.mxu0
    %v1498 = vadd.f32 %v1084, %v1497
    %1499 = vmatmul.f32.gmra.mxu0 %v1100
    %v1500 = vpop.f32.mrf.mxu0
    %v1501 = vadd.f32 %v1084, %v1500
    %1502 = vmatmul.f32.gmra.mxu0 %v1103
    %v1503 = vpop.f32.mrf.mxu0
    %v1504 = vadd.f32 %v1084, %v1503
    %1505 = vmatmul.f32.gmra.mxu0 %v1106
    %v1506 = vpop.f32.mrf.mxu0
    %v1507 = vadd.f32 %v1084, %v1506
    %1508 = vmatmul.f32.gmra.mxu0 %v1109
    %v1509 = vpop.f32.mrf.mxu0
    %v1510 = vadd.f32 %v1084, %v1509
    %1511 = vmatmul.f32.gmra.mxu0 %v1112
    %v1512 = vpop.f32.mrf.mxu0
    %v1513 = vadd.f32 %v1084, %v1512
    %1514 = vmatmul.f32.gmra.mxu0 %v1115
    %v1515 = vpop.f32.mrf.mxu0
    %v1516 = vadd.f32 %v1084, %v1515
    %1517 = vmatmul.f32.gmra.mxu0 %v1118
    %v1518 = vpop.f32.mrf.mxu0
    %v1519 = vadd.f32 %v1084, %v1518
    %1520 = vmatmul.f32.gmra.mxu0 %v1121
    %v1521 = vpop.f32.mrf.mxu0
    %v1522 = vadd.f32 %v1084, %v1521
    %1523 = vmatmul.f32.gmra.mxu0 %v1124
    %v1524 = vpop.f32.mrf.mxu0
    %v1525 = vadd.f32 %v1084, %v1524
    %1526 = vmatmul.f32.gmra.mxu0 %v1127
    %v1527 = vpop.f32.mrf.mxu0
    %v1528 = vadd.f32 %v1084, %v1527
    %1529 = vmatmul.f32.gmra.mxu0 %v1130
    %v1530 = vpop.f32.mrf.mxu0
    %v1531 = vadd.f32 %v1084, %v1530
    %1532 = vmatmul.f32.gmra.mxu0 %v1133
    %v1533 = vpop.f32.mrf.mxu0
    %v1534 = vadd.f32 %v1084, %v1533
    %1535 = vmatmul.f32.gmra.mxu0 %v1136
    %v1536 = vpop.f32.mrf.mxu0
    %v1537 = vadd.f32 %v1084, %v1536
    %1538 = vmatmul.f32.gmra.mxu0 %v1139
    %v1539 = vpop.f32.mrf.mxu0
    %v1540 = vadd.f32 %v1084, %v1539
    %1541 = vmatmul.f32.gmra.mxu0 %v1142
    %v1542 = vpop.f32.mrf.mxu0
    %v1543 = vadd.f32 %v1084, %v1542
    %1544 = vmatmul.f32.gmra.mxu0 %v1145
    %v1545 = vpop.f32.mrf.mxu0
    %v1546 = vadd.f32 %v1084, %v1545
    %1547 = vmatmul.f32.gmra.mxu0 %v1148
    %v1548 = vpop.f32.mrf.mxu0
    %v1549 = vadd.f32 %v1084, %v1548
    %1550 = vmatmul.f32.gmra.mxu0 %v1151
    %v1551 = vpop.f32.mrf.mxu0
    %v1552 = vadd.f32 %v1084, %v1551
    %1553 = vmatmul.f32.gmra.mxu0 %v1154
    %v1554 = vpop.f32.mrf.mxu0
    %v1555 = vadd.f32 %v1084, %v1554
    %1556 = vmatmul.f32.gmra.mxu0 %v1157
    %v1557 = vpop.f32.mrf.mxu0
    %v1558 = vadd.f32 %v1084, %v1557
    %1559 = vmatmul.f32.gmra.mxu0 %v1160
    %v1560 = vpop.f32.mrf.mxu0
    %v1561 = vadd.f32 %v1084, %v1560
    %1562 = vmatmul.f32.gmra.mxu0 %v1163
    %v1563 = vpop.f32.mrf.mxu0
    %v1564 = vadd.f32 %v1084, %v1563
    %1565 = vmatmul.f32.gmra.mxu0 %v1166
    %v1566 = vpop.f32.mrf.mxu0
    %v1567 = vadd.f32 %v1084, %v1566
    %1568 = vmatmul.f32.gmra.mxu0 %v1169
    %v1569 = vpop.f32.mrf.mxu0
    %v1570 = vadd.f32 %v1084, %v1569
    %1571 = vmatmul.f32.gmra.mxu0 %v1172
    %v1572 = vpop.f32.mrf.mxu0
    %v1573 = vadd.f32 %v1084, %v1572
    %1574 = vmatmul.f32.gmra.mxu0 %v1175
    %v1575 = vpop.f32.mrf.mxu0
    %v1576 = vadd.f32 %v1084, %v1575
    %1577 = vmatmul.f32.gmra.mxu0 %v1178
    %v1578 = vpop.f32.mrf.mxu0
    %v1579 = vadd.f32 %v1084, %v1578
    %1580 = vmatmul.f32.gmra.mxu0 %v1181
    %v1581 = vpop.f32.mrf.mxu0
    %v1582 = vadd.f32 %v1084, %v1581
    %1583 = vmatmul.f32.gmra.mxu0 %v1184
    %v1584 = vpop.f32.mrf.mxu0
    %v1585 = vadd.f32 %v1084, %v1584
    %1586 = vmatmul.f32.gmra.mxu0 %v1187
    %v1587 = vpop.f32.mrf.mxu0
    %v1588 = vadd.f32 %v1084, %v1587
    %1589 = vmatmul.f32.gmra.mxu0 %v1190
    %v1590 = vpop.f32.mrf.mxu0
    %v1591 = vadd.f32 %v1084, %v1590
    %1592 = vmatmul.f32.gmra.mxu0 %v1193
    %v1593 = vpop.f32.mrf.mxu0
    %v1594 = vadd.f32 %v1084, %v1593
    %1595 = vmatmul.f32.gmra.mxu0 %v1196
    %v1596 = vpop.f32.mrf.mxu0
    %v1597 = vadd.f32 %v1084, %v1596
    %1598 = vmatmul.f32.gmra.mxu0 %v1199
    %v1599 = vpop.f32.mrf.mxu0
    %v1600 = vadd.f32 %v1084, %v1599
    %1601 = vmatmul.f32.gmra.mxu0 %v1202
    %v1602 = vpop.f32.mrf.mxu0
    %v1603 = vadd.f32 %v1084, %v1602
    %1604 = vmatmul.f32.gmra.mxu0 %v1205
    %v1605 = vpop.f32.mrf.mxu0
    %v1606 = vadd.f32 %v1084, %v1605
    %1607 = vmatmul.f32.gmra.mxu0 %v1208
    %v1608 = vpop.f32.mrf.mxu0
    %v1609 = vadd.f32 %v1084, %v1608
    %1610 = vmatmul.f32.gmra.mxu0 %v1211
    %v1611 = vpop.f32.mrf.mxu0
    %v1612 = vadd.f32 %v1084, %v1611
    %1613 = vmatmul.f32.gmra.mxu0 %v1214
    %v1614 = vpop.f32.mrf.mxu0
    %v1615 = vadd.f32 %v1084, %v1614
    %1616 = vmatmul.f32.gmra.mxu0 %v1217
    %v1617 = vpop.f32.mrf.mxu0
    %v1618 = vadd.f32 %v1084, %v1617
    %1619 = vmatmul.f32.gmra.mxu0 %v1220
    %v1620 = vpop.f32.mrf.mxu0
    %v1621 = vadd.f32 %v1084, %v1620
    %1622 = vmatmul.f32.gmra.mxu0 %v1223
    %v1623 = vpop.f32.mrf.mxu0
    %v1624 = vadd.f32 %v1084, %v1623
    %1625 = vmatmul.f32.gmra.mxu0 %v1226
    %v1626 = vpop.f32.mrf.mxu0
    %v1627 = vadd.f32 %v1084, %v1626
    %1628 = vmatmul.f32.gmra.mxu0 %v1229
    %v1629 = vpop.f32.mrf.mxu0
    %v1630 = vadd.f32 %v1084, %v1629
    %1631 = vmatmul.f32.gmra.mxu0 %v1232
    %v1632 = vpop.f32.mrf.mxu0
    %v1633 = vadd.f32 %v1084, %v1632
    %1634 = vmatmul.f32.gmra.mxu0 %v1235
    %v1635 = vpop.f32.mrf.mxu0
    %v1636 = vadd.f32 %v1084, %v1635
    %1637 = vmatmul.f32.gmra.mxu0 %v1238
    %v1638 = vpop.f32.mrf.mxu0
    %v1639 = vadd.f32 %v1084, %v1638
    %1640 = vmatmul.f32.gmra.mxu0 %v1241
    %v1641 = vpop.f32.mrf.mxu0
    %v1642 = vadd.f32 %v1084, %v1641
    %1643 = vmatmul.f32.gmra.mxu0 %v1244
    %v1644 = vpop.f32.mrf.mxu0
    %v1645 = vadd.f32 %v1084, %v1644
    %1646 = vmatmul.f32.gmra.mxu0 %v1247
    %v1647 = vpop.f32.mrf.mxu0
    %v1648 = vadd.f32 %v1084, %v1647
    %1649 = vmatmul.f32.gmra.mxu0 %v1250
    %v1650 = vpop.f32.mrf.mxu0
    %v1651 = vadd.f32 %v1084, %v1650
    %1652 = vmatmul.f32.gmra.mxu0 %v1253
    %v1653 = vpop.f32.mrf.mxu0
    %v1654 = vadd.f32 %v1084, %v1653
    %1655 = vmatmul.f32.gmra.mxu0 %v1256
    %v1656 = vpop.f32.mrf.mxu0
    %v1657 = vadd.f32 %v1084, %v1656
    %1658 = vmatmul.f32.gmra.mxu0 %v1259
    %v1659 = vpop.f32.mrf.mxu0
    %v1660 = vadd.f32 %v1084, %v1659
    %1661 = vmatmul.f32.gmra.mxu0 %v1262
    %v1662 = vpop.f32.mrf.mxu0
    %v1663 = vadd.f32 %v1084, %v1662
    %1664 = vmatmul.f32.gmra.mxu0 %v1265
    %v1665 = vpop.f32.mrf.mxu0
    %v1666 = vadd.f32 %v1084, %v1665
    %1667 = vmatmul.f32.gmra.mxu0 %v1268
    %v1668 = vpop.f32.mrf.mxu0
    %v1669 = vadd.f32 %v1084, %v1668
    %1670 = vmatmul.f32.gmra.mxu0 %v1271
    %v1671 = vpop.f32.mrf.mxu0
    %v1672 = vadd.f32 %v1084, %v1671
    %1673 = vmatmul.f32.gmra.mxu0 %v1274
    %v1674 = vpop.f32.mrf.mxu0
    %v1675 = vadd.f32 %v1084, %v1674
    %1676 = vmatmul.f32.gmra.mxu0 %v1277
    %v1677 = vpop.f32.mrf.mxu0
    %v1678 = vadd.f32 %v1084, %v1677
    %1679 = vmatmul.f32.gmra.mxu0 %v1280
    %v1680 = vpop.f32.mrf.mxu0
    %v1681 = vadd.f32 %v1084, %v1680
    %1682 = vmatmul.f32.gmra.mxu0 %v1283
    %v1683 = vpop.f32.mrf.mxu0
    %v1684 = vadd.f32 %v1084, %v1683
    %1685 = vmatmul.f32.gmra.mxu0 %v1286
    %v1686 = vpop.f32.mrf.mxu0
    %v1687 = vadd.f32 %v1084, %v1686
    %1688 = vmatmul.f32.gmra.mxu0 %v1289
    %v1689 = vpop.f32.mrf.mxu0
    %v1690 = vadd.f32 %v1084, %v1689
    %1691 = vmatmul.f32.gmra.mxu0 %v1292
    %v1692 = vpop.f32.mrf.mxu0
    %v1693 = vadd.f32 %v1084, %v1692
    %1694 = vmatmul.f32.gmra.mxu0 %v1295
    %v1695 = vpop.f32.mrf.mxu0
    %v1696 = vadd.f32 %v1084, %v1695
    %1697 = vmatmul.f32.gmra.mxu0 %v1298
    %v1698 = vpop.f32.mrf.mxu0
    %v1699 = vadd.f32 %v1084, %v1698
    %1700 = vmatmul.f32.gmra.mxu0 %v1301
    %v1701 = vpop.f32.mrf.mxu0
    %v1702 = vadd.f32 %v1084, %v1701
    %1703 = vmatmul.f32.gmra.mxu0 %v1304
    %v1704 = vpop.f32.mrf.mxu0
    %v1705 = vadd.f32 %v1084, %v1704
    %1706 = vmatmul.f32.gmra.mxu0 %v1307
    %v1707 = vpop.f32.mrf.mxu0
    %v1708 = vadd.f32 %v1084, %v1707
    %1709 = vmatmul.f32.gmra.mxu0 %v1310
    %v1710 = vpop.f32.mrf.mxu0
    %v1711 = vadd.f32 %v1084, %v1710
    %1712 = vmatmul.f32.gmra.mxu0 %v1313
    %v1713 = vpop.f32.mrf.mxu0
    %v1714 = vadd.f32 %v1084, %v1713
    %1715 = vmatmul.f32.gmra.mxu0 %v1316
    %v1716 = vpop.f32.mrf.mxu0
    %v1717 = vadd.f32 %v1084, %v1716
    %1718 = vmatmul.f32.gmra.mxu0 %v1319
    %v1719 = vpop.f32.mrf.mxu0
    %v1720 = vadd.f32 %v1084, %v1719
    %1721 = vmatmul.f32.gmra.mxu0 %v1322
    %v1722 = vpop.f32.mrf.mxu0
    %v1723 = vadd.f32 %v1084, %v1722
    %1724 = vmatmul.f32.gmra.mxu0 %v1325
    %v1725 = vpop.f32.mrf.mxu0
    %v1726 = vadd.f32 %v1084, %v1725
    %1727 = vmatmul.f32.gmra.mxu0 %v1328
    %v1728 = vpop.f32.mrf.mxu0
    %v1729 = vadd.f32 %v1084, %v1728
    %1730 = vmatmul.f32.gmra.mxu0 %v1331
    %v1731 = vpop.f32.mrf.mxu0
    %v1732 = vadd.f32 %v1084, %v1731
    %1733 = vmatmul.f32.gmra.mxu0 %v1334
    %v1734 = vpop.f32.mrf.mxu0
    %v1735 = vadd.f32 %v1084, %v1734
    %1736 = vmatmul.f32.gmra.mxu0 %v1337
    %v1737 = vpop.f32.mrf.mxu0
    %v1738 = vadd.f32 %v1084, %v1737
    %1739 = vmatmul.f32.gmra.mxu0 %v1340
    %v1740 = vpop.f32.mrf.mxu0
    %v1741 = vadd.f32 %v1084, %v1740
    %1742 = vmatmul.f32.gmra.mxu0 %v1343
    %v1743 = vpop.f32.mrf.mxu0
    %v1744 = vadd.f32 %v1084, %v1743
    %1745 = vmatmul.f32.gmra.mxu0 %v1346
    %v1746 = vpop.f32.mrf.mxu0
    %v1747 = vadd.f32 %v1084, %v1746
    %1748 = vmatmul.f32.gmra.mxu0 %v1349
    %v1749 = vpop.f32.mrf.mxu0
    %v1750 = vadd.f32 %v1084, %v1749
    %1751 = vmatmul.f32.gmra.mxu0 %v1352
    %v1752 = vpop.f32.mrf.mxu0
    %v1753 = vadd.f32 %v1084, %v1752
    %1754 = vmatmul.f32.gmra.mxu0 %v1355
    %v1755 = vpop.f32.mrf.mxu0
    %v1756 = vadd.f32 %v1084, %v1755
    %1757 = vmatmul.f32.gmra.mxu0 %v1358
    %v1758 = vpop.f32.mrf.mxu0
    %v1759 = vadd.f32 %v1084, %v1758
    %1760 = vmatmul.f32.gmra.mxu0 %v1361
    %v1761 = vpop.f32.mrf.mxu0
    %v1762 = vadd.f32 %v1084, %v1761
    %1763 = vmatmul.f32.gmra.mxu0 %v1364
    %v1764 = vpop.f32.mrf.mxu0
    %v1765 = vadd.f32 %v1084, %v1764
    %1766 = vmatmul.f32.gmra.mxu0 %v1367
    %v1767 = vpop.f32.mrf.mxu0
    %v1768 = vadd.f32 %v1084, %v1767
    %1769 = vmatmul.f32.gmra.mxu0 %v1370
    %v1770 = vpop.f32.mrf.mxu0
    %v1771 = vadd.f32 %v1084, %v1770
    %1772 = vmatmul.f32.gmra.mxu0 %v1373
    %v1773 = vpop.f32.mrf.mxu0
    %v1774 = vadd.f32 %v1084, %v1773
    %1775 = vmatmul.f32.gmra.mxu0 %v1376
    %v1776 = vpop.f32.mrf.mxu0
    %v1777 = vadd.f32 %v1084, %v1776
    %1778 = vmatmul.f32.gmra.mxu0 %v1379
    %v1779 = vpop.f32.mrf.mxu0
    %v1780 = vadd.f32 %v1084, %v1779
    %1781 = vmatmul.f32.gmra.mxu0 %v1382
    %v1782 = vpop.f32.mrf.mxu0
    %v1783 = vadd.f32 %v1084, %v1782
    %1784 = vmatmul.f32.gmra.mxu0 %v1385
    %v1785 = vpop.f32.mrf.mxu0
    %v1786 = vadd.f32 %v1084, %v1785
    %1787 = vmatmul.f32.gmra.mxu0 %v1388
    %v1788 = vpop.f32.mrf.mxu0
    %v1789 = vadd.f32 %v1084, %v1788
    %1790 = vmatmul.f32.gmra.mxu0 %v1391
    %v1791 = vpop.f32.mrf.mxu0
    %v1792 = vadd.f32 %v1084, %v1791
    %1793 = vmatmul.f32.gmra.mxu0 %v1394
    %v1794 = vpop.f32.mrf.mxu0
    %v1795 = vadd.f32 %v1084, %v1794
    %1796 = vmatmul.f32.gmra.mxu0 %v1397
    %v1797 = vpop.f32.mrf.mxu0
    %v1798 = vadd.f32 %v1084, %v1797
    %1799 = vmatmul.f32.gmra.mxu0 %v1400
    %v1800 = vpop.f32.mrf.mxu0
    %v1801 = vadd.f32 %v1084, %v1800
    %1802 = vmatmul.f32.gmra.mxu0 %v1403
    %v1803 = vpop.f32.mrf.mxu0
    %v1804 = vadd.f32 %v1084, %v1803
    %1805 = vmatmul.f32.gmra.mxu0 %v1406
    %v1806 = vpop.f32.mrf.mxu0
    %v1807 = vadd.f32 %v1084, %v1806
    %1808 = vmatmul.f32.gmra.mxu0 %v1409
    %v1809 = vpop.f32.mrf.mxu0
    %v1810 = vadd.f32 %v1084, %v1809
    %1811 = vmatmul.f32.gmra.mxu0 %v1412
    %v1812 = vpop.f32.mrf.mxu0
    %v1813 = vadd.f32 %v1084, %v1812
    %1814 = vmatmul.f32.gmra.mxu0 %v1415
    %v1815 = vpop.f32.mrf.mxu0
    %v1816 = vadd.f32 %v1084, %v1815
    %1817 = vmatmul.f32.gmra.mxu0 %v1418
    %v1818 = vpop.f32.mrf.mxu0
    %v1819 = vadd.f32 %v1084, %v1818
    %1820 = vmatmul.f32.gmra.mxu0 %v1421
    %v1821 = vpop.f32.mrf.mxu0
    %v1822 = vadd.f32 %v1084, %v1821
    %1823 = vmatmul.f32.gmra.mxu0 %v1424
    %v1824 = vpop.f32.mrf.mxu0
    %v1825 = vadd.f32 %v1084, %v1824
    %1826 = vmatmul.f32.gmra.mxu0 %v1427
    %v1827 = vpop.f32.mrf.mxu0
    %v1828 = vadd.f32 %v1084, %v1827
    %1829 = vmatmul.f32.gmra.mxu0 %v1430
    %v1830 = vpop.f32.mrf.mxu0
    %v1831 = vadd.f32 %v1084, %v1830
    %1832 = vmatmul.f32.gmra.mxu0 %v1433
    %v1833 = vpop.f32.mrf.mxu0
    %v1834 = vadd.f32 %v1084, %v1833
    %1835 = vmatmul.f32.gmra.mxu0 %v1436
    %v1836 = vpop.f32.mrf.mxu0
    %v1837 = vadd.f32 %v1084, %v1836
    %1838 = vmatmul.f32.gmra.mxu0 %v1439
    %v1839 = vpop.f32.mrf.mxu0
    %v1840 = vadd.f32 %v1084, %v1839
    %1841 = vmatmul.f32.gmra.mxu0 %v1442
    %v1842 = vpop.f32.mrf.mxu0
    %v1843 = vadd.f32 %v1084, %v1842
    %1844 = vmatmul.f32.gmra.mxu0 %v1445
    %v1845 = vpop.f32.mrf.mxu0
    %v1846 = vadd.f32 %v1084, %v1845
    %1847 = vmatmul.f32.gmra.mxu0 %v1448
    %v1848 = vpop.f32.mrf.mxu0
    %v1849 = vadd.f32 %v1084, %v1848
    %1850 = vmatmul.f32.gmra.mxu0 %v1451
    %v1851 = vpop.f32.mrf.mxu0
    %v1852 = vadd.f32 %v1084, %v1851
    %1853 = vmatmul.f32.gmra.mxu0 %v1454
    %v1854 = vpop.f32.mrf.mxu0
    %v1855 = vadd.f32 %v1084, %v1854
    %1856 = vmatmul.f32.gmra.mxu0 %v1457
    %v1857 = vpop.f32.mrf.mxu0
    %v1858 = vadd.f32 %v1084, %v1857
    %1859 = vmatmul.f32.gmra.mxu0 %v1460
    %v1860 = vpop.f32.mrf.mxu0
    %v1861 = vadd.f32 %v1084, %v1860
    %1862 = vmatmul.f32.gmra.mxu0 %v1463
    %v1863 = vpop.f32.mrf.mxu0
    %v1864 = vadd.f32 %v1084, %v1863
    %1865 = vmatmul.f32.gmra.mxu0 %v1466
    %v1866 = vpop.f32.mrf.mxu0
    %v1867 = vadd.f32 %v1084, %v1866
    %1868 = vmatmul.f32.gmra.mxu0 %v1469
    %v1869 = vpop.f32.mrf.mxu0
    %v1870 = vadd.f32 %v1084, %v1869
    %1871 = vdwg.mxu0
    %v1872 = vmax.f32 %v1489, 0.0
    %v1873 = vmax.f32 %v1492, 0.0
    %v1874 = vmax.f32 %v1495, 0.0
    %v1875 = vmax.f32 %v1498, 0.0
    %v1876 = vmax.f32 %v1501, 0.0
    %v1877 = vmax.f32 %v1504, 0.0
    %v1878 = vmax.f32 %v1507, 0.0
    %v1879 = vmax.f32 %v1510, 0.0
    %v1880 = vmax.f32 %v1513, 0.0
    %v1881 = vmax.f32 %v1516, 0.0
    %v1882 = vmax.f32 %v1519, 0.0
    %v1883 = vmax.f32 %v1522, 0.0
    %v1884 = vmax.f32 %v1525, 0.0
    %v1885 = vmax.f32 %v1528, 0.0
    %v1886 = vmax.f32 %v1531, 0.0
    %v1887 = vmax.f32 %v1534, 0.0
    %v1888 = vmax.f32 %v1537, 0.0
    %v1889 = vmax.f32 %v1540, 0.0
    %v1890 = vmax.f32 %v1543, 0.0
    %v1891 = vmax.f32 %v1546, 0.0
    %v1892 = vmax.f32 %v1549, 0.0
    %v1893 = vmax.f32 %v1552, 0.0
    %v1894 = vmax.f32 %v1555, 0.0
    %v1895 = vmax.f32 %v1558, 0.0
    %v1896 = vmax.f32 %v1561, 0.0
    %v1897 = vmax.f32 %v1564, 0.0
    %v1898 = vmax.f32 %v1567, 0.0
    %v1899 = vmax.f32 %v1570, 0.0
    %v1900 = vmax.f32 %v1573, 0.0
    %v1901 = vmax.f32 %v1576, 0.0
    %v1902 = vmax.f32 %v1579, 0.0
    %v1903 = vmax.f32 %v1582, 0.0
    %v1904 = vmax.f32 %v1585, 0.0
    %v1905 = vmax.f32 %v1588, 0.0
    %v1906 = vmax.f32 %v1591, 0.0
    %v1907 = vmax.f32 %v1594, 0.0
    %v1908 = vmax.f32 %v1597, 0.0
    %v1909 = vmax.f32 %v1600, 0.0
    %v1910 = vmax.f32 %v1603, 0.0
    %v1911 = vmax.f32 %v1606, 0.0
    %v1912 = vmax.f32 %v1609, 0.0
    %v1913 = vmax.f32 %v1612, 0.0
    %v1914 = vmax.f32 %v1615, 0.0
    %v1915 = vmax.f32 %v1618, 0.0
    %v1916 = vmax.f32 %v1621, 0.0
    %v1917 = vmax.f32 %v1624, 0.0
    %v1918 = vmax.f32 %v1627, 0.0
    %v1919 = vmax.f32 %v1630, 0.0
    %v1920 = vmax.f32 %v1633, 0.0
    %v1921 = vmax.f32 %v1636, 0.0
    %v1922 = vmax.f32 %v1639, 0.0
    %v1923 = vmax.f32 %v1642, 0.0
    %v1924 = vmax.f32 %v1645, 0.0
    %v1925 = vmax.f32 %v1648, 0.0
    %v1926 = vmax.f32 %v1651, 0.0
    %v1927 = vmax.f32 %v1654, 0.0
    %v1928 = vmax.f32 %v1657, 0.0
    %v1929 = vmax.f32 %v1660, 0.0
    %v1930 = vmax.f32 %v1663, 0.0
    %v1931 = vmax.f32 %v1666, 0.0
    %v1932 = vmax.f32 %v1669, 0.0
    %v1933 = vmax.f32 %v1672, 0.0
    %v1934 = vmax.f32 %v1675, 0.0
    %v1935 = vmax.f32 %v1678, 0.0
    %v1936 = vmax.f32 %v1681, 0.0
    %v1937 = vmax.f32 %v1684, 0.0
    %v1938 = vmax.f32 %v1687, 0.0
    %v1939 = vmax.f32 %v1690, 0.0
    %v1940 = vmax.f32 %v1693, 0.0
    %v1941 = vmax.f32 %v1696, 0.0
    %v1942 = vmax.f32 %v1699, 0.0
    %v1943 = vmax.f32 %v1702, 0.0
    %v1944 = vmax.f32 %v1705, 0.0
    %v1945 = vmax.f32 %v1708, 0.0
    %v1946 = vmax.f32 %v1711, 0.0
    %v1947 = vmax.f32 %v1714, 0.0
    %v1948 = vmax.f32 %v1717, 0.0
    %v1949 = vmax.f32 %v1720, 0.0
    %v1950 = vmax.f32 %v1723, 0.0
    %v1951 = vmax.f32 %v1726, 0.0
    %v1952 = vmax.f32 %v1729, 0.0
    %v1953 = vmax.f32 %v1732, 0.0
    %v1954 = vmax.f32 %v1735, 0.0
    %v1955 = vmax.f32 %v1738, 0.0
    %v1956 = vmax.f32 %v1741, 0.0
    %v1957 = vmax.f32 %v1744, 0.0
    %v1958 = vmax.f32 %v1747, 0.0
    %v1959 = vmax.f32 %v1750, 0.0
    %v1960 = vmax.f32 %v1753, 0.0
    %v1961 = vmax.f32 %v1756, 0.0
    %v1962 = vmax.f32 %v1759, 0.0
    %v1963 = vmax.f32 %v1762, 0.0
    %v1964 = vmax.f32 %v1765, 0.0
    %v1965 = vmax.f32 %v1768, 0.0
    %v1966 = vmax.f32 %v1771, 0.0
    %v1967 = vmax.f32 %v1774, 0.0
    %v1968 = vmax.f32 %v1777, 0.0
    %v1969 = vmax.f32 %v1780, 0.0
    %v1970 = vmax.f32 %v1783, 0.0
    %v1971 = vmax.f32 %v1786, 0.0
    %v1972 = vmax.f32 %v1789, 0.0
    %v1973 = vmax.f32 %v1792, 0.0
    %v1974 = vmax.f32 %v1795, 0.0
    %v1975 = vmax.f32 %v1798, 0.0
    %v1976 = vmax.f32 %v1801, 0.0
    %v1977 = vmax.f32 %v1804, 0.0
    %v1978 = vmax.f32 %v1807, 0.0
    %v1979 = vmax.f32 %v1810, 0.0
    %v1980 = vmax.f32 %v1813, 0.0
    %v1981 = vmax.f32 %v1816, 0.0
    %v1982 = vmax.f32 %v1819, 0.0
    %v1983 = vmax.f32 %v1822, 0.0
    %v1984 = vmax.f32 %v1825, 0.0
    %v1985 = vmax.f32 %v1828, 0.0
    %v1986 = vmax.f32 %v1831, 0.0
    %v1987 = vmax.f32 %v1834, 0.0
    %v1988 = vmax.f32 %v1837, 0.0
    %v1989 = vmax.f32 %v1840, 0.0
    %v1990 = vmax.f32 %v1843, 0.0
    %v1991 = vmax.f32 %v1846, 0.0
    %v1992 = vmax.f32 %v1849, 0.0
    %v1993 = vmax.f32 %v1852, 0.0
    %v1994 = vmax.f32 %v1855, 0.0
    %v1995 = vmax.f32 %v1858, 0.0
    %v1996 = vmax.f32 %v1861, 0.0
    %v1997 = vmax.f32 %v1864, 0.0
    %v1998 = vmax.f32 %v1867, 0.0
    %v1999 = vmax.f32 %v1870, 0.0
    %v2000 = vld [vmem:[%s5] sm:$0x1]
    %v2001 = vld [vmem:[%s6] sm:$0x1]
    %v2003 = vsel %vm164, %v2001, 0
    %2005 = vmatpush.xpose.msra.mxu0 %v211
    %2006 = vmatpush.xpose.msra.mxu0 %v208
    %2007 = vmatpush.xpose.msra.mxu0 %v205
    %2008 = vmatpush.xpose.msra.mxu0 %v202
    %2009 = vmatpush.xpose.msra.mxu0 %v199
    %2010 = vmatpush.xpose.msra.mxu0 %v196
    %2011 = vmatpush.xpose.msra.mxu0 %v193
    %2012 = vmatpush.xpose.msra.mxu0 %v190
    %2013 = vmatpush.xpose.msra.mxu0 %v187
    %2014 = vmatpush.xpose.msra.mxu0 %v184
    %2015 = vmatpush.xpose.msra.mxu0 %v181
    %2016 = vmatpush.xpose.msra.mxu0 %v178
    %2017 = vmatpush.xpose.msra.mxu0 %v175
    %2018 = vmatpush.xpose.msra.mxu0 %v172
    %2019 = vmatpush.xpose.msra.mxu0 %v169
    %2020 = vmatpush.xpose.msra.mxu0 %v166
    %2021 = vmatmul.f32.gmra.mxu0 %v2003
    %v2022 = vpop.f32.mrf.mxu0
    %v2023 = vadd.f32 0.0, %v2022
    %2024 = vdwg.mxu0
    %2025 = vmatpush.xpose.msra.mxu0 %v259
    %2026 = vmatpush.xpose.msra.mxu0 %v256
    %2027 = vmatpush.xpose.msra.mxu0 %v253
    %2028 = vmatpush.xpose.msra.mxu0 %v250
    %2029 = vmatpush.xpose.msra.mxu0 %v247
    %2030 = vmatpush.xpose.msra.mxu0 %v244
    %2031 = vmatpush.xpose.msra.mxu0 %v241
    %2032 = vmatpush.xpose.msra.mxu0 %v238
    %2033 = vmatpush.xpose.msra.mxu0 %v235
    %2034 = vmatpush.xpose.msra.mxu0 %v232
    %2035 = vmatpush.xpose.msra.mxu0 %v229
    %2036 = vmatpush.xpose.msra.mxu0 %v226
    %2037 = vmatpush.xpose.msra.mxu0 %v223
    %2038 = vmatpush.xpose.msra.mxu0 %v220
    %2039 = vmatpush.xpose.msra.mxu0 %v217
    %2040 = vmatpush.xpose.msra.mxu0 %v214
    %2041 = vmatmul.f32.gmra.mxu0 %v2003
    %v2042 = vpop.f32.mrf.mxu0
    %v2043 = vadd.f32 0.0, %v2042
    %2044 = vdwg.mxu0
    %2045 = vmatpush.xpose.msra.mxu0 %v307
    %2046 = vmatpush.xpose.msra.mxu0 %v304
    %2047 = vmatpush.xpose.msra.mxu0 %v301
    %2048 = vmatpush.xpose.msra.mxu0 %v298
    %2049 = vmatpush.xpose.msra.mxu0 %v295
    %2050 = vmatpush.xpose.msra.mxu0 %v292
    %2051 = vmatpush.xpose.msra.mxu0 %v289
    %2052 = vmatpush.xpose.msra.mxu0 %v286
    %2053 = vmatpush.xpose.msra.mxu0 %v283
    %2054 = vmatpush.xpose.msra.mxu0 %v280
    %2055 = vmatpush.xpose.msra.mxu0 %v277
    %2056 = vmatpush.xpose.msra.mxu0 %v274
    %2057 = vmatpush.xpose.msra.mxu0 %v271
    %2058 = vmatpush.xpose.msra.mxu0 %v268
    %2059 = vmatpush.xpose.msra.mxu0 %v265
    %2060 = vmatpush.xpose.msra.mxu0 %v262
    %2061 = vmatmul.f32.gmra.mxu0 %v2003
    %v2062 = vpop.f32.mrf.mxu0
    %v2063 = vadd.f32 0.0, %v2062
    %2064 = vdwg.mxu0
    %2065 = vmatpush.xpose.msra.mxu0 %v355
    %2066 = vmatpush.xpose.msra.mxu0 %v352
    %2067 = vmatpush.xpose.msra.mxu0 %v349
    %2068 = vmatpush.xpose.msra.mxu0 %v346
    %2069 = vmatpush.xpose.msra.mxu0 %v343
    %2070 = vmatpush.xpose.msra.mxu0 %v340
    %2071 = vmatpush.xpose.msra.mxu0 %v337
    %2072 = vmatpush.xpose.msra.mxu0 %v334
    %2073 = vmatpush.xpose.msra.mxu0 %v331
    %2074 = vmatpush.xpose.msra.mxu0 %v328
    %2075 = vmatpush.xpose.msra.mxu0 %v325
    %2076 = vmatpush.xpose.msra.mxu0 %v322
    %2077 = vmatpush.xpose.msra.mxu0 %v319
    %2078 = vmatpush.xpose.msra.mxu0 %v316
    %2079 = vmatpush.xpose.msra.mxu0 %v313
    %2080 = vmatpush.xpose.msra.mxu0 %v310
    %2081 = vmatmul.f32.gmra.mxu0 %v2003
    %v2082 = vpop.f32.mrf.mxu0
    %v2083 = vadd.f32 0.0, %v2082
    %2084 = vdwg.mxu0
    %2085 = vmatpush.xpose.msra.mxu0 %v403
    %2086 = vmatpush.xpose.msra.mxu0 %v400
    %2087 = vmatpush.xpose.msra.mxu0 %v397
    %2088 = vmatpush.xpose.msra.mxu0 %v394
    %2089 = vmatpush.xpose.msra.mxu0 %v391
    %2090 = vmatpush.xpose.msra.mxu0 %v388
    %2091 = vmatpush.xpose.msra.mxu0 %v385
    %2092 = vmatpush.xpose.msra.mxu0 %v382
    %2093 = vmatpush.xpose.msra.mxu0 %v379
    %2094 = vmatpush.xpose.msra.mxu0 %v376
    %2095 = vmatpush.xpose.msra.mxu0 %v373
    %2096 = vmatpush.xpose.msra.mxu0 %v370
    %2097 = vmatpush.xpose.msra.mxu0 %v367
    %2098 = vmatpush.xpose.msra.mxu0 %v364
    %2099 = vmatpush.xpose.msra.mxu0 %v361
    %2100 = vmatpush.xpose.msra.mxu0 %v358
    %2101 = vmatmul.f32.gmra.mxu0 %v2003
    %v2102 = vpop.f32.mrf.mxu0
    %v2103 = vadd.f32 0.0, %v2102
    %2104 = vdwg.mxu0
    %2105 = vmatpush.xpose.msra.mxu0 %v451
    %2106 = vmatpush.xpose.msra.mxu0 %v448
    %2107 = vmatpush.xpose.msra.mxu0 %v445
    %2108 = vmatpush.xpose.msra.mxu0 %v442
    %2109 = vmatpush.xpose.msra.mxu0 %v439
    %2110 = vmatpush.xpose.msra.mxu0 %v436
    %2111 = vmatpush.xpose.msra.mxu0 %v433
    %2112 = vmatpush.xpose.msra.mxu0 %v430
    %2113 = vmatpush.xpose.msra.mxu0 %v427
    %2114 = vmatpush.xpose.msra.mxu0 %v424
    %2115 = vmatpush.xpose.msra.mxu0 %v421
    %2116 = vmatpush.xpose.msra.mxu0 %v418
    %2117 = vmatpush.xpose.msra.mxu0 %v415
    %2118 = vmatpush.xpose.msra.mxu0 %v412
    %2119 = vmatpush.xpose.msra.mxu0 %v409
    %2120 = vmatpush.xpose.msra.mxu0 %v406
    %2121 = vmatmul.f32.gmra.mxu0 %v2003
    %v2122 = vpop.f32.mrf.mxu0
    %v2123 = vadd.f32 0.0, %v2122
    %2124 = vdwg.mxu0
    %2125 = vmatpush.xpose.msra.mxu0 %v499
    %2126 = vmatpush.xpose.msra.mxu0 %v496
    %2127 = vmatpush.xpose.msra.mxu0 %v493
    %2128 = vmatpush.xpose.msra.mxu0 %v490
    %2129 = vmatpush.xpose.msra.mxu0 %v487
    %2130 = vmatpush.xpose.msra.mxu0 %v484
    %2131 = vmatpush.xpose.msra.mxu0 %v481
    %2132 = vmatpush.xpose.msra.mxu0 %v478
    %2133 = vmatpush.xpose.msra.mxu0 %v475
    %2134 = vmatpush.xpose.msra.mxu0 %v472
    %2135 = vmatpush.xpose.msra.mxu0 %v469
    %2136 = vmatpush.xpose.msra.mxu0 %v466
    %2137 = vmatpush.xpose.msra.mxu0 %v463
    %2138 = vmatpush.xpose.msra.mxu0 %v460
    %2139 = vmatpush.xpose.msra.mxu0 %v457
    %2140 = vmatpush.xpose.msra.mxu0 %v454
    %2141 = vmatmul.f32.gmra.mxu0 %v2003
    %v2142 = vpop.f32.mrf.mxu0
    %v2143 = vadd.f32 0.0, %v2142
    %2144 = vdwg.mxu0
    %2145 = vmatpush.xpose.msra.mxu0 %v547
    %2146 = vmatpush.xpose.msra.mxu0 %v544
    %2147 = vmatpush.xpose.msra.mxu0 %v541
    %2148 = vmatpush.xpose.msra.mxu0 %v538
    %2149 = vmatpush.xpose.msra.mxu0 %v535
    %2150 = vmatpush.xpose.msra.mxu0 %v532
    %2151 = vmatpush.xpose.msra.mxu0 %v529
    %2152 = vmatpush.xpose.msra.mxu0 %v526
    %2153 = vmatpush.xpose.msra.mxu0 %v523
    %2154 = vmatpush.xpose.msra.mxu0 %v520
    %2155 = vmatpush.xpose.msra.mxu0 %v517
    %2156 = vmatpush.xpose.msra.mxu0 %v514
    %2157 = vmatpush.xpose.msra.mxu0 %v511
    %2158 = vmatpush.xpose.msra.mxu0 %v508
    %2159 = vmatpush.xpose.msra.mxu0 %v505
    %2160 = vmatpush.xpose.msra.mxu0 %v502
    %2161 = vmatmul.f32.gmra.mxu0 %v2003
    %v2162 = vpop.f32.mrf.mxu0
    %v2163 = vadd.f32 0.0, %v2162
    %2164 = vdwg.mxu0
    %v2166 = vsel %vm1086, %v2000, 0
    %v2169 = vsel %vm1086, %v1872, 0
    %v2172 = vsel %vm1086, %v1873, 0
    %v2175 = vsel %vm1086, %v1874, 0
    %v2178 = vsel %vm1086, %v1875, 0
    %v2181 = vsel %vm1086, %v1876, 0
    %v2184 = vsel %vm1086, %v1877, 0
    %v2187 = vsel %vm1086, %v1878, 0
    %v2190 = vsel %vm1086, %v1879, 0
    %v2193 = vsel %vm1086, %v1880, 0
    %v2196 = vsel %vm1086, %v1881, 0
    %v2199 = vsel %vm1086, %v1882, 0
    %v2202 = vsel %vm1086, %v1883, 0
    %v2205 = vsel %vm1086, %v1884, 0
    %v2208 = vsel %vm1086, %v1885, 0
    %v2211 = vsel %vm1086, %v1886, 0
    %v2214 = vsel %vm1086, %v1887, 0
    %v2217 = vsel %vm1086, %v1888, 0
    %v2220 = vsel %vm1086, %v1889, 0
    %v2223 = vsel %vm1086, %v1890, 0
    %v2226 = vsel %vm1086, %v1891, 0
    %v2229 = vsel %vm1086, %v1892, 0
    %v2232 = vsel %vm1086, %v1893, 0
    %v2235 = vsel %vm1086, %v1894, 0
    %v2238 = vsel %vm1086, %v1895, 0
    %v2241 = vsel %vm1086, %v1896, 0
    %v2244 = vsel %vm1086, %v1897, 0
    %v2247 = vsel %vm1086, %v1898, 0
    %v2250 = vsel %vm1086, %v1899, 0
    %v2253 = vsel %vm1086, %v1900, 0
    %v2256 = vsel %vm1086, %v1901, 0
    %v2259 = vsel %vm1086, %v1902, 0
    %v2262 = vsel %vm1086, %v1903, 0
    %v2265 = vsel %vm1086, %v1904, 0
    %v2268 = vsel %vm1086, %v1905, 0
    %v2271 = vsel %vm1086, %v1906, 0
    %v2274 = vsel %vm1086, %v1907, 0
    %v2277 = vsel %vm1086, %v1908, 0
    %v2280 = vsel %vm1086, %v1909, 0
    %v2283 = vsel %vm1086, %v1910, 0
    %v2286 = vsel %vm1086, %v1911, 0
    %v2289 = vsel %vm1086, %v1912, 0
    %v2292 = vsel %vm1086, %v1913, 0
    %v2295 = vsel %vm1086, %v1914, 0
    %v2298 = vsel %vm1086, %v1915, 0
    %v2301 = vsel %vm1086, %v1916, 0
    %v2304 = vsel %vm1086, %v1917, 0
    %v2307 = vsel %vm1086, %v1918, 0
    %v2310 = vsel %vm1086, %v1919, 0
    %v2313 = vsel %vm1086, %v1920, 0
    %v2316 = vsel %vm1086, %v1921, 0
    %v2319 = vsel %vm1086, %v1922, 0
    %v2322 = vsel %vm1086, %v1923, 0
    %v2325 = vsel %vm1086, %v1924, 0
    %v2328 = vsel %vm1086, %v1925, 0
    %v2331 = vsel %vm1086, %v1926, 0
    %v2334 = vsel %vm1086, %v1927, 0
    %v2337 = vsel %vm1086, %v1928, 0
    %v2340 = vsel %vm1086, %v1929, 0
    %v2343 = vsel %vm1086, %v1930, 0
    %v2346 = vsel %vm1086, %v1931, 0
    %v2349 = vsel %vm1086, %v1932, 0
    %v2352 = vsel %vm1086, %v1933, 0
    %v2355 = vsel %vm1086, %v1934, 0
    %v2358 = vsel %vm1086, %v1935, 0
    %v2361 = vsel %vm1086, %v1936, 0
    %v2364 = vsel %vm1086, %v1937, 0
    %v2367 = vsel %vm1086, %v1938, 0
    %v2370 = vsel %vm1086, %v1939, 0
    %v2373 = vsel %vm1086, %v1940, 0
    %v2376 = vsel %vm1086, %v1941, 0
    %v2379 = vsel %vm1086, %v1942, 0
    %v2382 = vsel %vm1086, %v1943, 0
    %v2385 = vsel %vm1086, %v1944, 0
    %v2388 = vsel %vm1086, %v1945, 0
    %v2391 = vsel %vm1086, %v1946, 0
    %v2394 = vsel %vm1086, %v1947, 0
    %v2397 = vsel %vm1086, %v1948, 0
    %v2400 = vsel %vm1086, %v1949, 0
    %v2403 = vsel %vm1086, %v1950, 0
    %v2406 = vsel %vm1086, %v1951, 0
    %v2409 = vsel %vm1086, %v1952, 0
    %v2412 = vsel %vm1086, %v1953, 0
    %v2415 = vsel %vm1086, %v1954, 0
    %v2418 = vsel %vm1086, %v1955, 0
    %v2421 = vsel %vm1086, %v1956, 0
    %v2424 = vsel %vm1086, %v1957, 0
    %v2427 = vsel %vm1086, %v1958, 0
    %v2430 = vsel %vm1086, %v1959, 0
    %v2433 = vsel %vm1086, %v1960, 0
    %v2436 = vsel %vm1086, %v1961, 0
    %v2439 = vsel %vm1086, %v1962, 0
    %v2442 = vsel %vm1086, %v1963, 0
    %v2445 = vsel %vm1086, %v1964, 0
    %v2448 = vsel %vm1086, %v1965, 0
    %v2451 = vsel %vm1086, %v1966, 0
    %v2454 = vsel %vm1086, %v1967, 0
    %v2457 = vsel %vm1086, %v1968, 0
    %v2460 = vsel %vm1086, %v1969, 0
    %v2463 = vsel %vm1086, %v1970, 0
    %v2466 = vsel %vm1086, %v1971, 0
    %v2469 = vsel %vm1086, %v1972, 0
    %v2472 = vsel %vm1086, %v1973, 0
    %v2475 = vsel %vm1086, %v1974, 0
    %v2478 = vsel %vm1086, %v1975, 0
    %v2481 = vsel %vm1086, %v1976, 0
    %v2484 = vsel %vm1086, %v1977, 0
    %v2487 = vsel %vm1086, %v1978, 0
    %v2490 = vsel %vm1086, %v1979, 0
    %v2493 = vsel %vm1086, %v1980, 0
    %v2496 = vsel %vm1086, %v1981, 0
    %v2499 = vsel %vm1086, %v1982, 0
    %v2502 = vsel %vm1086, %v1983, 0
    %v2505 = vsel %vm1086, %v1984, 0
    %v2508 = vsel %vm1086, %v1985, 0
    %v2511 = vsel %vm1086, %v1986, 0
    %v2514 = vsel %vm1086, %v1987, 0
    %v2517 = vsel %vm1086, %v1988, 0
    %v2520 = vsel %vm1086, %v1989, 0
    %v2523 = vsel %vm1086, %v1990, 0
    %v2526 = vsel %vm1086, %v1991, 0
    %v2529 = vsel %vm1086, %v1992, 0
    %v2532 = vsel %vm1086, %v1993, 0
    %v2535 = vsel %vm1086, %v1994, 0
    %v2538 = vsel %vm1086, %v1995, 0
    %v2541 = vsel %vm1086, %v1996, 0
    %v2544 = vsel %vm1086, %v1997, 0
    %v2547 = vsel %vm1086, %v1998, 0
    %v2550 = vsel %vm1086, %v1999, 0
    %2552 = vmatpush.xpose.msra.mxu0 %v2214
    %2553 = vmatpush.xpose.msra.mxu0 %v2211
    %2554 = vmatpush.xpose.msra.mxu0 %v2208
    %2555 = vmatpush.xpose.msra.mxu0 %v2205
    %2556 = vmatpush.xpose.msra.mxu0 %v2202
    %2557 = vmatpush.xpose.msra.mxu0 %v2199
    %2558 = vmatpush.xpose.msra.mxu0 %v2196
    %2559 = vmatpush.xpose.msra.mxu0 %v2193
    %2560 = vmatpush.xpose.msra.mxu0 %v2190
    %2561 = vmatpush.xpose.msra.mxu0 %v2187
    %2562 = vmatpush.xpose.msra.mxu0 %v2184
    %2563 = vmatpush.xpose.msra.mxu0 %v2181
    %2564 = vmatpush.xpose.msra.mxu0 %v2178
    %2565 = vmatpush.xpose.msra.mxu0 %v2175
    %2566 = vmatpush.xpose.msra.mxu0 %v2172
    %2567 = vmatpush.xpose.msra.mxu0 %v2169
    %2568 = vmatmul.f32.gmra.mxu0 %v2166
    %v2569 = vpop.f32.mrf.mxu0
    %v2570 = vadd.f32 %v2023, %v2569
    %2571 = vdwg.mxu0
    %2572 = vmatpush.xpose.msra.mxu0 %v2262
    %2573 = vmatpush.xpose.msra.mxu0 %v2259
    %2574 = vmatpush.xpose.msra.mxu0 %v2256
    %2575 = vmatpush.xpose.msra.mxu0 %v2253
    %2576 = vmatpush.xpose.msra.mxu0 %v2250
    %2577 = vmatpush.xpose.msra.mxu0 %v2247
    %2578 = vmatpush.xpose.msra.mxu0 %v2244
    %2579 = vmatpush.xpose.msra.mxu0 %v2241
    %2580 = vmatpush.xpose.msra.mxu0 %v2238
    %2581 = vmatpush.xpose.msra.mxu0 %v2235
    %2582 = vmatpush.xpose.msra.mxu0 %v2232
    %2583 = vmatpush.xpose.msra.mxu0 %v2229
    %2584 = vmatpush.xpose.msra.mxu0 %v2226
    %2585 = vmatpush.xpose.msra.mxu0 %v2223
    %2586 = vmatpush.xpose.msra.mxu0 %v2220
    %2587 = vmatpush.xpose.msra.mxu0 %v2217
    %2588 = vmatmul.f32.gmra.mxu0 %v2166
    %v2589 = vpop.f32.mrf.mxu0
    %v2590 = vadd.f32 %v2043, %v2589
    %2591 = vdwg.mxu0
    %2592 = vmatpush.xpose.msra.mxu0 %v2310
    %2593 = vmatpush.xpose.msra.mxu0 %v2307
    %2594 = vmatpush.xpose.msra.mxu0 %v2304
    %2595 = vmatpush.xpose.msra.mxu0 %v2301
    %2596 = vmatpush.xpose.msra.mxu0 %v2298
    %2597 = vmatpush.xpose.msra.mxu0 %v2295
    %2598 = vmatpush.xpose.msra.mxu0 %v2292
    %2599 = vmatpush.xpose.msra.mxu0 %v2289
    %2600 = vmatpush.xpose.msra.mxu0 %v2286
    %2601 = vmatpush.xpose.msra.mxu0 %v2283
    %2602 = vmatpush.xpose.msra.mxu0 %v2280
    %2603 = vmatpush.xpose.msra.mxu0 %v2277
    %2604 = vmatpush.xpose.msra.mxu0 %v2274
    %2605 = vmatpush.xpose.msra.mxu0 %v2271
    %2606 = vmatpush.xpose.msra.mxu0 %v2268
    %2607 = vmatpush.xpose.msra.mxu0 %v2265
    %2608 = vmatmul.f32.gmra.mxu0 %v2166
    %v2609 = vpop.f32.mrf.mxu0
    %v2610 = vadd.f32 %v2063, %v2609
    %2611 = vdwg.mxu0
    %2612 = vmatpush.xpose.msra.mxu0 %v2358
    %2613 = vmatpush.xpose.msra.mxu0 %v2355
    %2614 = vmatpush.xpose.msra.mxu0 %v2352
    %2615 = vmatpush.xpose.msra.mxu0 %v2349
    %2616 = vmatpush.xpose.msra.mxu0 %v2346
    %2617 = vmatpush.xpose.msra.mxu0 %v2343
    %2618 = vmatpush.xpose.msra.mxu0 %v2340
    %2619 = vmatpush.xpose.msra.mxu0 %v2337
    %2620 = vmatpush.xpose.msra.mxu0 %v2334
    %2621 = vmatpush.xpose.msra.mxu0 %v2331
    %2622 = vmatpush.xpose.msra.mxu0 %v2328
    %2623 = vmatpush.xpose.msra.mxu0 %v2325
    %2624 = vmatpush.xpose.msra.mxu0 %v2322
    %2625 = vmatpush.xpose.msra.mxu0 %v2319
    %2626 = vmatpush.xpose.msra.mxu0 %v2316
    %2627 = vmatpush.xpose.msra.mxu0 %v2313
    %2628 = vmatmul.f32.gmra.mxu0 %v2166
    %v2629 = vpop.f32.mrf.mxu0
    %v2630 = vadd.f32 %v2083, %v2629
    %2631 = vdwg.mxu0
    %2632 = vmatpush.xpose.msra.mxu0 %v2406
    %2633 = vmatpush.xpose.msra.mxu0 %v2403
    %2634 = vmatpush.xpose.msra.mxu0 %v2400
    %2635 = vmatpush.xpose.msra.mxu0 %v2397
    %2636 = vmatpush.xpose.msra.mxu0 %v2394
    %2637 = vmatpush.xpose.msra.mxu0 %v2391
    %2638 = vmatpush.xpose.msra.mxu0 %v2388
    %2639 = vmatpush.xpose.msra.mxu0 %v2385
    %2640 = vmatpush.xpose.msra.mxu0 %v2382
    %2641 = vmatpush.xpose.msra.mxu0 %v2379
    %2642 = vmatpush.xpose.msra.mxu0 %v2376
    %2643 = vmatpush.xpose.msra.mxu0 %v2373
    %2644 = vmatpush.xpose.msra.mxu0 %v2370
    %2645 = vmatpush.xpose.msra.mxu0 %v2367
    %2646 = vmatpush.xpose.msra.mxu0 %v2364
    %2647 = vmatpush.xpose.msra.mxu0 %v2361
    %2648 = vmatmul.f32.gmra.mxu0 %v2166
    %v2649 = vpop.f32.mrf.mxu0
    %v2650 = vadd.f32 %v2103, %v2649
    %2651 = vdwg.mxu0
    %2652 = vmatpush.xpose.msra.mxu0 %v2454
    %2653 = vmatpush.xpose.msra.mxu0 %v2451
    %2654 = vmatpush.xpose.msra.mxu0 %v2448
    %2655 = vmatpush.xpose.msra.mxu0 %v2445
    %2656 = vmatpush.xpose.msra.mxu0 %v2442
    %2657 = vmatpush.xpose.msra.mxu0 %v2439
    %2658 = vmatpush.xpose.msra.mxu0 %v2436
    %2659 = vmatpush.xpose.msra.mxu0 %v2433
    %2660 = vmatpush.xpose.msra.mxu0 %v2430
    %2661 = vmatpush.xpose.msra.mxu0 %v2427
    %2662 = vmatpush.xpose.msra.mxu0 %v2424
    %2663 = vmatpush.xpose.msra.mxu0 %v2421
    %2664 = vmatpush.xpose.msra.mxu0 %v2418
    %2665 = vmatpush.xpose.msra.mxu0 %v2415
    %2666 = vmatpush.xpose.msra.mxu0 %v2412
    %2667 = vmatpush.xpose.msra.mxu0 %v2409
    %2668 = vmatmul.f32.gmra.mxu0 %v2166
    %v2669 = vpop.f32.mrf.mxu0
    %v2670 = vadd.f32 %v2123, %v2669
    %2671 = vdwg.mxu0
    %2672 = vmatpush.xpose.msra.mxu0 %v2502
    %2673 = vmatpush.xpose.msra.mxu0 %v2499
    %2674 = vmatpush.xpose.msra.mxu0 %v2496
    %2675 = vmatpush.xpose.msra.mxu0 %v2493
    %2676 = vmatpush.xpose.msra.mxu0 %v2490
    %2677 = vmatpush.xpose.msra.mxu0 %v2487
    %2678 = vmatpush.xpose.msra.mxu0 %v2484
    %2679 = vmatpush.xpose.msra.mxu0 %v2481
    %2680 = vmatpush.xpose.msra.mxu0 %v2478
    %2681 = vmatpush.xpose.msra.mxu0 %v2475
    %2682 = vmatpush.xpose.msra.mxu0 %v2472
    %2683 = vmatpush.xpose.msra.mxu0 %v2469
    %2684 = vmatpush.xpose.msra.mxu0 %v2466
    %2685 = vmatpush.xpose.msra.mxu0 %v2463
    %2686 = vmatpush.xpose.msra.mxu0 %v2460
    %2687 = vmatpush.xpose.msra.mxu0 %v2457
    %2688 = vmatmul.f32.gmra.mxu0 %v2166
    %v2689 = vpop.f32.mrf.mxu0
    %v2690 = vadd.f32 %v2143, %v2689
    %2691 = vdwg.mxu0
    %2692 = vmatpush.xpose.msra.mxu0 %v2550
    %2693 = vmatpush.xpose.msra.mxu0 %v2547
    %2694 = vmatpush.xpose.msra.mxu0 %v2544
    %2695 = vmatpush.xpose.msra.mxu0 %v2541
    %2696 = vmatpush.xpose.msra.mxu0 %v2538
    %2697 = vmatpush.xpose.msra.mxu0 %v2535
    %2698 = vmatpush.xpose.msra.mxu0 %v2532
    %2699 = vmatpush.xpose.msra.mxu0 %v2529
    %2700 = vmatpush.xpose.msra.mxu0 %v2526
    %2701 = vmatpush.xpose.msra.mxu0 %v2523
    %2702 = vmatpush.xpose.msra.mxu0 %v2520
    %2703 = vmatpush.xpose.msra.mxu0 %v2517
    %2704 = vmatpush.xpose.msra.mxu0 %v2514
    %2705 = vmatpush.xpose.msra.mxu0 %v2511
    %2706 = vmatpush.xpose.msra.mxu0 %v2508
    %2707 = vmatpush.xpose.msra.mxu0 %v2505
    %2708 = vmatmul.f32.gmra.mxu0 %v2166
    %v2709 = vpop.f32.mrf.mxu0
    %v2710 = vadd.f32 %v2163, %v2709
    %2711 = vdwg.mxu0
    %s2712 = sld [smem:[#allocation2]]
    %v2713 = vstv %s2712
    %v2714 = vadd.f32 %v2570, %v2713
    %v2715 = vadd.f32 %v2590, %v2713
    %v2716 = vadd.f32 %v2610, %v2713
    %v2717 = vadd.f32 %v2630, %v2713
    %v2718 = vadd.f32 %v2650, %v2713
    %v2719 = vadd.f32 %v2670, %v2713
    %v2720 = vadd.f32 %v2690, %v2713
    %v2721 = vadd.f32 %v2710, %v2713
    %v2730 = vrot.slane %v2715, 7
    %v2731 = vrot.slane %v2716, 6
    %v2732 = vrot.slane %v2717, 5
    %v2733 = vrot.slane %v2718, 4
    %v2734 = vrot.slane %v2719, 3
    %v2735 = vrot.slane %v2720, 2
    %v2736 = vrot.slane %v2721, 1
    %vm2737 = vcmask 1040384
    %v2738 = vsel %vm2737, %v2714, %v2730
    %vm2739 = vcmask 1042434
    %v2740 = vsel %vm2739, %v2731, %v2732
    %vm2741 = vcmask 1041408
    %v2742 = vsel %vm2741, %v2738, %v2740
    %vm2743 = vcmask 1044484
    %v2744 = vsel %vm2743, %v2733, %v2734
    %vm2745 = vcmask 1046534
    %v2746 = vsel %vm2745, %v2735, %v2736
    %vm2747 = vcmask 1045508
    %v2748 = vsel %vm2747, %v2744, %v2746
    %vm2749 = vcmask 1043456
    %v2750 = vsel %vm2749, %v2742, %v2748
    %2752 = vst [vmem:[#allocation3] sm:$0xff] %v2750
    // Predicated region
    $region34: #{tpu_custom_call.1} parent=1 // pred_check
      _
    $region35: #{tpu_custom_call.1} parent=1 // pred_check_branch
      %2754 = sbr.rel (0) target = $region37
    $region36: #{tpu_custom_call.1} parent=1 // pred_region
      %2756 = vsyncadd [#allocation4], 0
      %s2758 = sshll.u32 [#allocation3], 4
      %s2759 = int_to_ptr.vmem [resolvable:$true] %s2758
      %s2760 = sshll.u32 %s8, 4
      %s2761 = int_to_ptr.hbm [resolvable:$true] %s2760
      %2763 = dma.vmem_to_hbm [thread:$0]  %s2759, 128, %s2761, [#allocation4]
    $region37: #{tpu_custom_call.1} parent=1 // pred_fallthru
      _
    // Predicated region
    $region38: #{tpu_custom_call.1} parent=1 // pred_check
      _
    $region39: #{tpu_custom_call.1} parent=1 // pred_check_branch
      %2765 = sbr.rel (0) target = $region41
    $region40: #{tpu_custom_call.1} parent=1 // pred_region
      %2767 = dma.done [#allocation4], 128
    $region41: #{tpu_custom_call.1} parent=1 // pred_fallthru
      _
    %2768 = vsyncpa [#allocation4], 1

</llo_original>
